<compile_context>
chip_gen: v5e
topology: v5e:2x2
jax: 0.10.0
libtpu: 0.0.40
codegen_flags: <defaults>
</compile_context>

<pallas_src>
import functools

import jax
import jax.numpy as jnp
from jax.experimental import pallas as pl
from jax.experimental.pallas import tpu as pltpu

LANES = 128


def _round_up(v, m):
    return ((v + m - 1) // m) * m


# ------------------------------ fused kernel ---------------------------------

def _lplm_fused_kernel(*refs, num_gru, num_fc, hidden, seq_len, batch_pad):
    """Fused GRU stack + MLP head.

    refs layout:
      refs[0]                     x      (T*Bp, Din0)   bf16, time-major flat
      per GRU layer (4 refs):     wih_p  (Din, 128)     bf16, gates packed [r|z|n|0]
                                  whh_p  (H, 128)       f32
                                  bih_p  (1, 128)       f32  (b_i* with b_hr,b_hz folded in)
                                  bhn_p  (1, 128)       f32  (b_hn in n lanes only)
      per FC layer (2 refs):      w (K,128) bf16, b (1,128) f32   (lane-dense padded)
      refs[-1]                    out    (T*Bp, 128)    f32
    """
    x_ref = refs[0]
    pos = 1
    gru = [refs[pos + 4 * l: pos + 4 * l + 4] for l in range(num_gru)]
    pos += 4 * num_gru
    fc = refs[pos: pos + 2 * num_fc]
    pos += 2 * num_fc
    out_ref = refs[pos]

    H = hidden
    T = seq_len
    Bp = batch_pad

    feats = x_ref[...]                                    # bf16 (T*Bp, Din0)

    for (wih_ref, whh_ref, bih_ref, bhn_ref) in gru:
        # ---- hoisted, loop-invariant loads ----
        wih = wih_ref[...]                                # bf16 (Din, 128)
        whh = whh_ref[...]                                # f32  (H, 128)
        bih = bih_ref[...]                                # f32  (1, 128), r/z hh-biases folded
        bhn = bhn_ref[...]                                # f32  (1, 128), b_hn in n lanes

        # ---- hoisted input projection for ALL timesteps (bf16 MXU, f32 acc) ----
        gx = jnp.dot(feats, wih, preferred_element_type=jnp.float32) + bih   # (T*Bp, 128)

        # ---- serial recurrence, fully unrolled; one packed 128-wide matmul/step ----
        h = jnp.zeros((Bp, H), jnp.float32)
        hs = []
        for t in range(T):
            r0 = t * Bp                                   # static, sublane-tile aligned
            gx_t = gx[r0:r0 + Bp, :]                      # (Bp, 128)
            gh = jnp.dot(h, whh, preferred_element_type=jnp.float32) + bhn   # (Bp, 128)
            rz = jax.nn.sigmoid(gx_t + gh)                # r in [0,H), z in [H,2H)
            r = rz[:, 0:H]
            z = rz[:, H:2 * H]
            n = jnp.tanh(gx_t[:, 2 * H:3 * H] + r * gh[:, 2 * H:3 * H])
            h = (1.0 - z) * n + z * h                     # (Bp, H)
            hs.append(h)
        # keep the layer output in vregs (no VMEM scratch round-trip)
        feats = jnp.concatenate(hs, axis=0).astype(jnp.bfloat16)             # (T*Bp, H)

    # ---- lane-dense MLP head on the whole (T*Bp, .) slab (bf16 MXU, f32 acc) ----
    hcur = feats
    for i in range(num_fc):
        w = fc[2 * i][...]                                # bf16 (K, 128)
        b = fc[2 * i + 1][...]                            # f32  (1, 128)
        hcur = jnp.dot(hcur, w, preferred_element_type=jnp.float32) + b
        if i < num_fc - 1:
            hcur = jnp.maximum(hcur, 0.0).astype(jnp.bfloat16)
    out_ref[...] = jax.nn.sigmoid(hcur)                   # (T*Bp, 128), col 0 is real


# ---------------------------- parameter packing -------------------------------

def pack_params(params, hidden):
    """Logical params -> fused / packed / padded kernel layout.

    GRU layer l: w_ih (3, Din, H), w_hh (3, H, H), b_ih (3, H), b_hh (3, H)
      -> wih_p (Din, 128) bf16, whh_p (H, 128) f32, bih_p (1, 128) f32,
         bhn_p (1, 128) f32.
    Gate g occupies lanes [g*H, (g+1)*H) of the single 128-lane block; padding
    columns are zero.  b_hr / b_hz are folded into bih_p (off the serial path);
    b_hn stays separate because PyTorch applies it inside r * (W_hn h + b_hn).
    FC layers: every output width is padded to 128 zero columns so all MLP
    matmuls and the kernel output are lane-dense.
    """
    H = hidden
    # TODO(synk): for hidden_size > 42 (3H > 128) fall back to one 128-aligned
    # block per gate (previous layout) instead of the packed single block.
    assert 3 * H <= LANES, "packed-gate layout requires 3*hidden <= 128"

    packed_gru = []
    for (w_ih, w_hh, b_ih, b_hh) in params["gru"]:
        din = w_ih.shape[1]
        wih_p = jnp.zeros((din, LANES), jnp.float32)
        whh_p = jnp.zeros((H, LANES), jnp.float32)
        bih_p = jnp.zeros((1, LANES), jnp.float32)
        bhn_p = jnp.zeros((1, LANES), jnp.float32)
        for g in range(3):
            c = g * H
            wih_p = wih_p.at[:, c:c + H].set(w_ih[g])
            whh_p = whh_p.at[:, c:c + H].set(w_hh[g])
        bih_p = bih_p.at[0, 0:H].set(b_ih[0] + b_hh[0])           # r: fold b_hr
        bih_p = bih_p.at[0, H:2 * H].set(b_ih[1] + b_hh[1])       # z: fold b_hz
        bih_p = bih_p.at[0, 2 * H:3 * H].set(b_ih[2])             # n: input bias only
        bhn_p = bhn_p.at[0, 2 * H:3 * H].set(b_hh[2])             # n: hidden bias
        packed_gru.append((wih_p.astype(jnp.bfloat16), whh_p, bih_p, bhn_p))

    fc_w, fc_b = [], []
    in_dim = H
    for w, b in zip(params["fc_w"], params["fc_b"]):
        kin, kout = w.shape
        w_p = jnp.zeros((in_dim, LANES), jnp.float32).at[:kin, :kout].set(w)
        b_p = jnp.zeros((1, LANES), jnp.float32).at[:, :kout].set(b)
        fc_w.append(w_p.astype(jnp.bfloat16))
        fc_b.append(b_p)
        in_dim = LANES
    return {"gru": packed_gru, "fc_w": fc_w, "fc_b": fc_b, "hidden": H}


# ------------------------------ forward wrapper --------------------------------

def lplm_forward(x, packed):
    """x: (B, T, alphabet) -> squeeze(sigmoid(fc(GRU(x)))), shape (B, T)."""
    B, T, A = x.shape
    H = packed["hidden"]
    Bp = _round_up(B, 8)
    N = T * Bp

    # time-major, batch padded to 8 sublanes, flattened to (T*Bp, A); bf16 upload
    xt = jnp.transpose(x.astype(jnp.float32), (1, 0, 2))
    xt = jnp.pad(xt, ((0, 0), (0, Bp - B), (0, 0))).reshape(N, A).astype(jnp.bfloat16)

    args = [xt]
    for layer in packed["gru"]:
        args.extend(layer)
    for w, b in zip(packed["fc_w"], packed["fc_b"]):
        args.append(w)
        args.append(b)

    vmem = pl.BlockSpec(memory_space=pltpu.MemorySpace.VMEM)
    kern = functools.partial(
        _lplm_fused_kernel,
        num_gru=len(packed["gru"]),
        num_fc=len(packed["fc_w"]),
        hidden=H,
        seq_len=T,
        batch_pad=Bp,
    )
    # Single-program call: at B=2 / T=8 a batch grid (even on v7x megacore) only
    # adds per-step overhead; VMEM footprint < 0.5 MiB so defaults are fine.
    out = pl.pallas_call(
        kern,
        out_shape=jax.ShapeDtypeStruct((N, LANES), jnp.float32),
        in_specs=[vmem] * len(args),
        out_specs=vmem,
    )(*args)

    sel = out[:, 0].reshape(T, Bp)[:, :B].T               # (B, T), drop padding
    return jnp.squeeze(sel)                               # matches torch.squeeze


# --------------------------- deterministic params ------------------------------

def init_params(key, alphabet_size, hidden_size, num_layers):
    layer_sizes = [128, 64, 32, 16, 8]
    gru_params = []
    stdv = 1.0 / jnp.sqrt(jnp.float32(hidden_size))
    for layer in range(num_layers):
        din = alphabet_size if layer == 0 else hidden_size
        key, k1, k2, k3, k4 = jax.random.split(key, 5)
        w_ih = jax.random.uniform(k1, (3, din, hidden_size), jnp.float32, -stdv, stdv)
        w_hh = jax.random.uniform(k2, (3, hidden_size, hidden_size), jnp.float32, -stdv, stdv)
        b_ih = jax.random.uniform(k3, (3, hidden_size), jnp.float32, -stdv, stdv)
        b_hh = jax.random.uniform(k4, (3, hidden_size), jnp.float32, -stdv, stdv)
        gru_params.append((w_ih, w_hh, b_ih, b_hh))

    dims = [hidden_size] + layer_sizes + [1]
    fc_w, fc_b = [], []
    for i in range(len(dims) - 1):
        key, kw, kb = jax.random.split(key, 3)
        bound = 1.0 / jnp.sqrt(jnp.float32(dims[i]))
        fc_w.append(jax.random.uniform(kw, (dims[i], dims[i + 1]), jnp.float32, -bound, bound))
        fc_b.append(jax.random.uniform(kb, (1, dims[i + 1]), jnp.float32, -bound, bound))
    return {"gru": gru_params, "fc_w": fc_w, "fc_b": fc_b}


# ------------------------------ pure-JAX reference -----------------------------

def reference_forward(x, params):
    B, T, _ = x.shape
    h_seq = x.astype(jnp.float32)
    for (w_ih, w_hh, b_ih, b_hh) in params["gru"]:
        H = w_hh.shape[-1]
        h = jnp.zeros((B, H), jnp.float32)
        outs = []
        for t in range(T):
            xt = h_seq[:, t, :]
            r = jax.nn.sigmoid(xt @ w_ih[0] + b_ih[0] + h @ w_hh[0] + b_hh[0])
            z = jax.nn.sigmoid(xt @ w_ih[1] + b_ih[1] + h @ w_hh[1] + b_hh[1])
            n = jnp.tanh(xt @ w_ih[2] + b_ih[2] + r * (h @ w_hh[2] + b_hh[2]))
            h = (1.0 - z) * n + z * h
            outs.append(h)
        h_seq = jnp.stack(outs, axis=1)
    out = h_seq.reshape(B * T, -1)
    for i, (w, b) in enumerate(zip(params["fc_w"], params["fc_b"])):
        out = out @ w + b
        if i < len(params["fc_w"]) - 1:
            out = jnp.maximum(out, 0.0)
    return jnp.squeeze(jax.nn.sigmoid(out).reshape(B, T, 1))


# ----------------------------------- main ---------------------------------------

if __name__ == "__main__":
    batch = 2
    seq = 8
    alphabet_size = 16   # len(char2idx)
    hidden_size = 32
    num_layers = 2

    key = jax.random.PRNGKey(0)
    key, kx = jax.random.split(key)
    # one-hot character encoding, shape (batch, seq, alphabet)
    idx = jax.random.randint(kx, (batch, seq), 0, alphabet_size)
    x = jax.nn.one_hot(idx, alphabet_size, dtype=jnp.float32)

    params = init_params(key, alphabet_size, hidden_size, num_layers)
    packed = pack_params(params, hidden_size)

    out = lplm_forward(x, packed)
    out = jax.block_until_ready(out)

    assert out.shape == (batch, seq), out.shape
    assert bool(jnp.all(jnp.isfinite(out)))
    assert bool(jnp.all((out > 0.0) & (out < 1.0)))        # sigmoid range

    ref = reference_forward(x, params)
    max_err = float(jnp.max(jnp.abs(out - ref)))
    # Tolerance reflects bf16 operands on the non-recurrent matmuls (input
    # projections + MLP head); the recurrence itself stays f32.  A structural
    # bug (gate misalignment / bias fold / weight layout) gives errors >> 1e-2.
    assert max_err < 5e-3, f"mismatch vs reference, max abs err = {max_err}"

    print("KERNEL_OK")
</pallas_src>

<mosaic_0001>
module attributes {stable_mosaic.version = 11 : i64} {
  func.func @_lplm_fused_kernel(%arg0: memref<64x16xbf16, #tpu.memory_space<vmem>>, %arg1: memref<16x128xbf16, #tpu.memory_space<vmem>>, %arg2: memref<32x128xf32, #tpu.memory_space<vmem>>, %arg3: memref<1x128xf32, #tpu.memory_space<vmem>>, %arg4: memref<1x128xf32, #tpu.memory_space<vmem>>, %arg5: memref<32x128xbf16, #tpu.memory_space<vmem>>, %arg6: memref<32x128xf32, #tpu.memory_space<vmem>>, %arg7: memref<1x128xf32, #tpu.memory_space<vmem>>, %arg8: memref<1x128xf32, #tpu.memory_space<vmem>>, %arg9: memref<32x128xbf16, #tpu.memory_space<vmem>>, %arg10: memref<1x128xf32, #tpu.memory_space<vmem>>, %arg11: memref<128x128xbf16, #tpu.memory_space<vmem>>, %arg12: memref<1x128xf32, #tpu.memory_space<vmem>>, %arg13: memref<128x128xbf16, #tpu.memory_space<vmem>>, %arg14: memref<1x128xf32, #tpu.memory_space<vmem>>, %arg15: memref<128x128xbf16, #tpu.memory_space<vmem>>, %arg16: memref<1x128xf32, #tpu.memory_space<vmem>>, %arg17: memref<128x128xbf16, #tpu.memory_space<vmem>>, %arg18: memref<1x128xf32, #tpu.memory_space<vmem>>, %arg19: memref<128x128xbf16, #tpu.memory_space<vmem>>, %arg20: memref<1x128xf32, #tpu.memory_space<vmem>>, %arg21: memref<64x128xf32, #tpu.memory_space<vmem>>) attributes {dimension_semantics = [], scalar_prefetch = 0 : i64, scratch_operands = 0 : i64, tpu.core_type = #tpu.core_type<tc>} {
    %c0 = arith.constant 0 : index
    %c0_0 = arith.constant 0 : index
    %0 = vector.load %arg0[%c0, %c0_0] : memref<64x16xbf16, #tpu.memory_space<vmem>>, vector<64x16xbf16>
    %c0_1 = arith.constant 0 : index
    %c0_2 = arith.constant 0 : index
    %1 = vector.load %arg1[%c0_1, %c0_2] : memref<16x128xbf16, #tpu.memory_space<vmem>>, vector<16x128xbf16>
    %c0_3 = arith.constant 0 : index
    %c0_4 = arith.constant 0 : index
    %2 = vector.load %arg2[%c0_3, %c0_4] : memref<32x128xf32, #tpu.memory_space<vmem>>, vector<32x128xf32>
    %c0_5 = arith.constant 0 : index
    %c0_6 = arith.constant 0 : index
    %3 = vector.load %arg3[%c0_5, %c0_6] : memref<1x128xf32, #tpu.memory_space<vmem>>, vector<1x128xf32>
    %c0_7 = arith.constant 0 : index
    %c0_8 = arith.constant 0 : index
    %4 = vector.load %arg4[%c0_7, %c0_8] : memref<1x128xf32, #tpu.memory_space<vmem>>, vector<1x128xf32>
    %cst = arith.constant dense<0.000000e+00> : vector<64x128xf32>
    %5 = tpu.matmul %0, %1, %cst {dimension_numbers = #tpu.dot_dimension_numbers<[1], [0], [0], [1], [0, 0, 1, 1], [], []>} : vector<64x16xbf16>, vector<16x128xbf16>, vector<64x128xf32> -> vector<64x128xf32>
    %6 = vector.broadcast %3 : vector<1x128xf32> to vector<64x128xf32>
    %7 = arith.addf %5, %6 : vector<64x128xf32>
    %cst_9 = arith.constant 0.000000e+00 : f32
    %8 = vector.broadcast %cst_9 : f32 to vector<8x32xf32>
    %9 = vector.extract_strided_slice %7 {offsets = [0, 0], sizes = [8, 128], strides = [1, 1]} : vector<64x128xf32> to vector<8x128xf32>
    %cst_10 = arith.constant dense<0.000000e+00> : vector<8x128xf32>
    %10 = tpu.matmul %8, %2, %cst_10 {dimension_numbers = #tpu.dot_dimension_numbers<[1], [0], [0], [1], [0, 0, 1, 1], [], []>} : vector<8x32xf32>, vector<32x128xf32>, vector<8x128xf32> -> vector<8x128xf32>
    %11 = vector.broadcast %4 : vector<1x128xf32> to vector<8x128xf32>
    %12 = arith.addf %10, %11 : vector<8x128xf32>
    %13 = arith.addf %9, %12 : vector<8x128xf32>
    %14 = arith.negf %13 : vector<8x128xf32>
    %15 = math.exp %14 : vector<8x128xf32>
    %cst_11 = arith.constant 1.000000e+00 : f32
    %16 = vector.broadcast %cst_11 : f32 to vector<8x128xf32>
    %17 = arith.addf %16, %15 : vector<8x128xf32>
    %18 = arith.divf %16, %17 : vector<8x128xf32>
    %19 = vector.extract_strided_slice %18 {offsets = [0, 0], sizes = [8, 32], strides = [1, 1]} : vector<8x128xf32> to vector<8x32xf32>
    %20 = vector.extract_strided_slice %18 {offsets = [0, 32], sizes = [8, 32], strides = [1, 1]} : vector<8x128xf32> to vector<8x32xf32>
    %21 = vector.extract_strided_slice %9 {offsets = [0, 64], sizes = [8, 32], strides = [1, 1]} : vector<8x128xf32> to vector<8x32xf32>
    %22 = vector.extract_strided_slice %12 {offsets = [0, 64], sizes = [8, 32], strides = [1, 1]} : vector<8x128xf32> to vector<8x32xf32>
    %23 = arith.mulf %19, %22 : vector<8x32xf32>
    %24 = arith.addf %21, %23 : vector<8x32xf32>
    %25 = math.tanh %24 : vector<8x32xf32>
    %cst_12 = arith.constant 1.000000e+00 : f32
    %26 = vector.broadcast %cst_12 : f32 to vector<8x32xf32>
    %27 = arith.subf %26, %20 : vector<8x32xf32>
    %28 = arith.mulf %27, %25 : vector<8x32xf32>
    %29 = arith.mulf %20, %8 : vector<8x32xf32>
    %30 = arith.addf %28, %29 : vector<8x32xf32>
    %31 = vector.extract_strided_slice %7 {offsets = [8, 0], sizes = [8, 128], strides = [1, 1]} : vector<64x128xf32> to vector<8x128xf32>
    %cst_13 = arith.constant dense<0.000000e+00> : vector<8x128xf32>
    %32 = tpu.matmul %30, %2, %cst_13 {dimension_numbers = #tpu.dot_dimension_numbers<[1], [0], [0], [1], [0, 0, 1, 1], [], []>} : vector<8x32xf32>, vector<32x128xf32>, vector<8x128xf32> -> vector<8x128xf32>
    %33 = vector.broadcast %4 : vector<1x128xf32> to vector<8x128xf32>
    %34 = arith.addf %32, %33 : vector<8x128xf32>
    %35 = arith.addf %31, %34 : vector<8x128xf32>
    %36 = arith.negf %35 : vector<8x128xf32>
    %37 = math.exp %36 : vector<8x128xf32>
    %cst_14 = arith.constant 1.000000e+00 : f32
    %38 = vector.broadcast %cst_14 : f32 to vector<8x128xf32>
    %39 = arith.addf %38, %37 : vector<8x128xf32>
    %40 = arith.divf %38, %39 : vector<8x128xf32>
    %41 = vector.extract_strided_slice %40 {offsets = [0, 0], sizes = [8, 32], strides = [1, 1]} : vector<8x128xf32> to vector<8x32xf32>
    %42 = vector.extract_strided_slice %40 {offsets = [0, 32], sizes = [8, 32], strides = [1, 1]} : vector<8x128xf32> to vector<8x32xf32>
    %43 = vector.extract_strided_slice %31 {offsets = [0, 64], sizes = [8, 32], strides = [1, 1]} : vector<8x128xf32> to vector<8x32xf32>
    %44 = vector.extract_strided_slice %34 {offsets = [0, 64], sizes = [8, 32], strides = [1, 1]} : vector<8x128xf32> to vector<8x32xf32>
    %45 = arith.mulf %41, %44 : vector<8x32xf32>
    %46 = arith.addf %43, %45 : vector<8x32xf32>
    %47 = math.tanh %46 : vector<8x32xf32>
    %cst_15 = arith.constant 1.000000e+00 : f32
    %48 = vector.broadcast %cst_15 : f32 to vector<8x32xf32>
    %49 = arith.subf %48, %42 : vector<8x32xf32>
    %50 = arith.mulf %49, %47 : vector<8x32xf32>
    %51 = arith.mulf %42, %30 : vector<8x32xf32>
    %52 = arith.addf %50, %51 : vector<8x32xf32>
    %53 = vector.extract_strided_slice %7 {offsets = [16, 0], sizes = [8, 128], strides = [1, 1]} : vector<64x128xf32> to vector<8x128xf32>
    %cst_16 = arith.constant dense<0.000000e+00> : vector<8x128xf32>
    %54 = tpu.matmul %52, %2, %cst_16 {dimension_numbers = #tpu.dot_dimension_numbers<[1], [0], [0], [1], [0, 0, 1, 1], [], []>} : vector<8x32xf32>, vector<32x128xf32>, vector<8x128xf32> -> vector<8x128xf32>
    %55 = vector.broadcast %4 : vector<1x128xf32> to vector<8x128xf32>
    %56 = arith.addf %54, %55 : vector<8x128xf32>
    %57 = arith.addf %53, %56 : vector<8x128xf32>
    %58 = arith.negf %57 : vector<8x128xf32>
    %59 = math.exp %58 : vector<8x128xf32>
    %cst_17 = arith.constant 1.000000e+00 : f32
    %60 = vector.broadcast %cst_17 : f32 to vector<8x128xf32>
    %61 = arith.addf %60, %59 : vector<8x128xf32>
    %62 = arith.divf %60, %61 : vector<8x128xf32>
    %63 = vector.extract_strided_slice %62 {offsets = [0, 0], sizes = [8, 32], strides = [1, 1]} : vector<8x128xf32> to vector<8x32xf32>
    %64 = vector.extract_strided_slice %62 {offsets = [0, 32], sizes = [8, 32], strides = [1, 1]} : vector<8x128xf32> to vector<8x32xf32>
    %65 = vector.extract_strided_slice %53 {offsets = [0, 64], sizes = [8, 32], strides = [1, 1]} : vector<8x128xf32> to vector<8x32xf32>
    %66 = vector.extract_strided_slice %56 {offsets = [0, 64], sizes = [8, 32], strides = [1, 1]} : vector<8x128xf32> to vector<8x32xf32>
    %67 = arith.mulf %63, %66 : vector<8x32xf32>
    %68 = arith.addf %65, %67 : vector<8x32xf32>
    %69 = math.tanh %68 : vector<8x32xf32>
    %cst_18 = arith.constant 1.000000e+00 : f32
    %70 = vector.broadcast %cst_18 : f32 to vector<8x32xf32>
    %71 = arith.subf %70, %64 : vector<8x32xf32>
    %72 = arith.mulf %71, %69 : vector<8x32xf32>
    %73 = arith.mulf %64, %52 : vector<8x32xf32>
    %74 = arith.addf %72, %73 : vector<8x32xf32>
    %75 = vector.extract_strided_slice %7 {offsets = [24, 0], sizes = [8, 128], strides = [1, 1]} : vector<64x128xf32> to vector<8x128xf32>
    %cst_19 = arith.constant dense<0.000000e+00> : vector<8x128xf32>
    %76 = tpu.matmul %74, %2, %cst_19 {dimension_numbers = #tpu.dot_dimension_numbers<[1], [0], [0], [1], [0, 0, 1, 1], [], []>} : vector<8x32xf32>, vector<32x128xf32>, vector<8x128xf32> -> vector<8x128xf32>
    %77 = vector.broadcast %4 : vector<1x128xf32> to vector<8x128xf32>
    %78 = arith.addf %76, %77 : vector<8x128xf32>
    %79 = arith.addf %75, %78 : vector<8x128xf32>
    %80 = arith.negf %79 : vector<8x128xf32>
    %81 = math.exp %80 : vector<8x128xf32>
    %cst_20 = arith.constant 1.000000e+00 : f32
    %82 = vector.broadcast %cst_20 : f32 to vector<8x128xf32>
    %83 = arith.addf %82, %81 : vector<8x128xf32>
    %84 = arith.divf %82, %83 : vector<8x128xf32>
    %85 = vector.extract_strided_slice %84 {offsets = [0, 0], sizes = [8, 32], strides = [1, 1]} : vector<8x128xf32> to vector<8x32xf32>
    %86 = vector.extract_strided_slice %84 {offsets = [0, 32], sizes = [8, 32], strides = [1, 1]} : vector<8x128xf32> to vector<8x32xf32>
    %87 = vector.extract_strided_slice %75 {offsets = [0, 64], sizes = [8, 32], strides = [1, 1]} : vector<8x128xf32> to vector<8x32xf32>
    %88 = vector.extract_strided_slice %78 {offsets = [0, 64], sizes = [8, 32], strides = [1, 1]} : vector<8x128xf32> to vector<8x32xf32>
    %89 = arith.mulf %85, %88 : vector<8x32xf32>
    %90 = arith.addf %87, %89 : vector<8x32xf32>
    %91 = math.tanh %90 : vector<8x32xf32>
    %cst_21 = arith.constant 1.000000e+00 : f32
    %92 = vector.broadcast %cst_21 : f32 to vector<8x32xf32>
    %93 = arith.subf %92, %86 : vector<8x32xf32>
    %94 = arith.mulf %93, %91 : vector<8x32xf32>
    %95 = arith.mulf %86, %74 : vector<8x32xf32>
    %96 = arith.addf %94, %95 : vector<8x32xf32>
    %97 = vector.extract_strided_slice %7 {offsets = [32, 0], sizes = [8, 128], strides = [1, 1]} : vector<64x128xf32> to vector<8x128xf32>
    %cst_22 = arith.constant dense<0.000000e+00> : vector<8x128xf32>
    %98 = tpu.matmul %96, %2, %cst_22 {dimension_numbers = #tpu.dot_dimension_numbers<[1], [0], [0], [1], [0, 0, 1, 1], [], []>} : vector<8x32xf32>, vector<32x128xf32>, vector<8x128xf32> -> vector<8x128xf32>
    %99 = vector.broadcast %4 : vector<1x128xf32> to vector<8x128xf32>
    %100 = arith.addf %98, %99 : vector<8x128xf32>
    %101 = arith.addf %97, %100 : vector<8x128xf32>
    %102 = arith.negf %101 : vector<8x128xf32>
    %103 = math.exp %102 : vector<8x128xf32>
    %cst_23 = arith.constant 1.000000e+00 : f32
    %104 = vector.broadcast %cst_23 : f32 to vector<8x128xf32>
    %105 = arith.addf %104, %103 : vector<8x128xf32>
    %106 = arith.divf %104, %105 : vector<8x128xf32>
    %107 = vector.extract_strided_slice %106 {offsets = [0, 0], sizes = [8, 32], strides = [1, 1]} : vector<8x128xf32> to vector<8x32xf32>
    %108 = vector.extract_strided_slice %106 {offsets = [0, 32], sizes = [8, 32], strides = [1, 1]} : vector<8x128xf32> to vector<8x32xf32>
    %109 = vector.extract_strided_slice %97 {offsets = [0, 64], sizes = [8, 32], strides = [1, 1]} : vector<8x128xf32> to vector<8x32xf32>
    %110 = vector.extract_strided_slice %100 {offsets = [0, 64], sizes = [8, 32], strides = [1, 1]} : vector<8x128xf32> to vector<8x32xf32>
    %111 = arith.mulf %107, %110 : vector<8x32xf32>
    %112 = arith.addf %109, %111 : vector<8x32xf32>
    %113 = math.tanh %112 : vector<8x32xf32>
    %cst_24 = arith.constant 1.000000e+00 : f32
    %114 = vector.broadcast %cst_24 : f32 to vector<8x32xf32>
    %115 = arith.subf %114, %108 : vector<8x32xf32>
    %116 = arith.mulf %115, %113 : vector<8x32xf32>
    %117 = arith.mulf %108, %96 : vector<8x32xf32>
    %118 = arith.addf %116, %117 : vector<8x32xf32>
    %119 = vector.extract_strided_slice %7 {offsets = [40, 0], sizes = [8, 128], strides = [1, 1]} : vector<64x128xf32> to vector<8x128xf32>
    %cst_25 = arith.constant dense<0.000000e+00> : vector<8x128xf32>
    %120 = tpu.matmul %118, %2, %cst_25 {dimension_numbers = #tpu.dot_dimension_numbers<[1], [0], [0], [1], [0, 0, 1, 1], [], []>} : vector<8x32xf32>, vector<32x128xf32>, vector<8x128xf32> -> vector<8x128xf32>
    %121 = vector.broadcast %4 : vector<1x128xf32> to vector<8x128xf32>
    %122 = arith.addf %120, %121 : vector<8x128xf32>
    %123 = arith.addf %119, %122 : vector<8x128xf32>
    %124 = arith.negf %123 : vector<8x128xf32>
    %125 = math.exp %124 : vector<8x128xf32>
    %cst_26 = arith.constant 1.000000e+00 : f32
    %126 = vector.broadcast %cst_26 : f32 to vector<8x128xf32>
    %127 = arith.addf %126, %125 : vector<8x128xf32>
    %128 = arith.divf %126, %127 : vector<8x128xf32>
    %129 = vector.extract_strided_slice %128 {offsets = [0, 0], sizes = [8, 32], strides = [1, 1]} : vector<8x128xf32> to vector<8x32xf32>
    %130 = vector.extract_strided_slice %128 {offsets = [0, 32], sizes = [8, 32], strides = [1, 1]} : vector<8x128xf32> to vector<8x32xf32>
    %131 = vector.extract_strided_slice %119 {offsets = [0, 64], sizes = [8, 32], strides = [1, 1]} : vector<8x128xf32> to vector<8x32xf32>
    %132 = vector.extract_strided_slice %122 {offsets = [0, 64], sizes = [8, 32], strides = [1, 1]} : vector<8x128xf32> to vector<8x32xf32>
    %133 = arith.mulf %129, %132 : vector<8x32xf32>
    %134 = arith.addf %131, %133 : vector<8x32xf32>
    %135 = math.tanh %134 : vector<8x32xf32>
    %cst_27 = arith.constant 1.000000e+00 : f32
    %136 = vector.broadcast %cst_27 : f32 to vector<8x32xf32>
    %137 = arith.subf %136, %130 : vector<8x32xf32>
    %138 = arith.mulf %137, %135 : vector<8x32xf32>
    %139 = arith.mulf %130, %118 : vector<8x32xf32>
    %140 = arith.addf %138, %139 : vector<8x32xf32>
    %141 = vector.extract_strided_slice %7 {offsets = [48, 0], sizes = [8, 128], strides = [1, 1]} : vector<64x128xf32> to vector<8x128xf32>
    %cst_28 = arith.constant dense<0.000000e+00> : vector<8x128xf32>
    %142 = tpu.matmul %140, %2, %cst_28 {dimension_numbers = #tpu.dot_dimension_numbers<[1], [0], [0], [1], [0, 0, 1, 1], [], []>} : vector<8x32xf32>, vector<32x128xf32>, vector<8x128xf32> -> vector<8x128xf32>
    %143 = vector.broadcast %4 : vector<1x128xf32> to vector<8x128xf32>
    %144 = arith.addf %142, %143 : vector<8x128xf32>
    %145 = arith.addf %141, %144 : vector<8x128xf32>
    %146 = arith.negf %145 : vector<8x128xf32>
    %147 = math.exp %146 : vector<8x128xf32>
    %cst_29 = arith.constant 1.000000e+00 : f32
    %148 = vector.broadcast %cst_29 : f32 to vector<8x128xf32>
    %149 = arith.addf %148, %147 : vector<8x128xf32>
    %150 = arith.divf %148, %149 : vector<8x128xf32>
    %151 = vector.extract_strided_slice %150 {offsets = [0, 0], sizes = [8, 32], strides = [1, 1]} : vector<8x128xf32> to vector<8x32xf32>
    %152 = vector.extract_strided_slice %150 {offsets = [0, 32], sizes = [8, 32], strides = [1, 1]} : vector<8x128xf32> to vector<8x32xf32>
    %153 = vector.extract_strided_slice %141 {offsets = [0, 64], sizes = [8, 32], strides = [1, 1]} : vector<8x128xf32> to vector<8x32xf32>
    %154 = vector.extract_strided_slice %144 {offsets = [0, 64], sizes = [8, 32], strides = [1, 1]} : vector<8x128xf32> to vector<8x32xf32>
    %155 = arith.mulf %151, %154 : vector<8x32xf32>
    %156 = arith.addf %153, %155 : vector<8x32xf32>
    %157 = math.tanh %156 : vector<8x32xf32>
    %cst_30 = arith.constant 1.000000e+00 : f32
    %158 = vector.broadcast %cst_30 : f32 to vector<8x32xf32>
    %159 = arith.subf %158, %152 : vector<8x32xf32>
    %160 = arith.mulf %159, %157 : vector<8x32xf32>
    %161 = arith.mulf %152, %140 : vector<8x32xf32>
    %162 = arith.addf %160, %161 : vector<8x32xf32>
    %163 = vector.extract_strided_slice %7 {offsets = [56, 0], sizes = [8, 128], strides = [1, 1]} : vector<64x128xf32> to vector<8x128xf32>
    %cst_31 = arith.constant dense<0.000000e+00> : vector<8x128xf32>
    %164 = tpu.matmul %162, %2, %cst_31 {dimension_numbers = #tpu.dot_dimension_numbers<[1], [0], [0], [1], [0, 0, 1, 1], [], []>} : vector<8x32xf32>, vector<32x128xf32>, vector<8x128xf32> -> vector<8x128xf32>
    %165 = vector.broadcast %4 : vector<1x128xf32> to vector<8x128xf32>
    %166 = arith.addf %164, %165 : vector<8x128xf32>
    %167 = arith.addf %163, %166 : vector<8x128xf32>
    %168 = arith.negf %167 : vector<8x128xf32>
    %169 = math.exp %168 : vector<8x128xf32>
    %cst_32 = arith.constant 1.000000e+00 : f32
    %170 = vector.broadcast %cst_32 : f32 to vector<8x128xf32>
    %171 = arith.addf %170, %169 : vector<8x128xf32>
    %172 = arith.divf %170, %171 : vector<8x128xf32>
    %173 = vector.extract_strided_slice %172 {offsets = [0, 0], sizes = [8, 32], strides = [1, 1]} : vector<8x128xf32> to vector<8x32xf32>
    %174 = vector.extract_strided_slice %172 {offsets = [0, 32], sizes = [8, 32], strides = [1, 1]} : vector<8x128xf32> to vector<8x32xf32>
    %175 = vector.extract_strided_slice %163 {offsets = [0, 64], sizes = [8, 32], strides = [1, 1]} : vector<8x128xf32> to vector<8x32xf32>
    %176 = vector.extract_strided_slice %166 {offsets = [0, 64], sizes = [8, 32], strides = [1, 1]} : vector<8x128xf32> to vector<8x32xf32>
    %177 = arith.mulf %173, %176 : vector<8x32xf32>
    %178 = arith.addf %175, %177 : vector<8x32xf32>
    %179 = math.tanh %178 : vector<8x32xf32>
    %cst_33 = arith.constant 1.000000e+00 : f32
    %180 = vector.broadcast %cst_33 : f32 to vector<8x32xf32>
    %181 = arith.subf %180, %174 : vector<8x32xf32>
    %182 = arith.mulf %181, %179 : vector<8x32xf32>
    %183 = arith.mulf %174, %162 : vector<8x32xf32>
    %184 = arith.addf %182, %183 : vector<8x32xf32>
    %185 = tpu.concatenate %30, %52, %74, %96, %118, %140, %162, %184 in 0 : vector<8x32xf32>, vector<8x32xf32>, vector<8x32xf32>, vector<8x32xf32>, vector<8x32xf32>, vector<8x32xf32>, vector<8x32xf32>, vector<8x32xf32> -> vector<64x32xf32>
    %186 = arith.truncf %185 : vector<64x32xf32> to vector<64x32xbf16>
    %c0_34 = arith.constant 0 : index
    %c0_35 = arith.constant 0 : index
    %187 = vector.load %arg5[%c0_34, %c0_35] : memref<32x128xbf16, #tpu.memory_space<vmem>>, vector<32x128xbf16>
    %c0_36 = arith.constant 0 : index
    %c0_37 = arith.constant 0 : index
    %188 = vector.load %arg6[%c0_36, %c0_37] : memref<32x128xf32, #tpu.memory_space<vmem>>, vector<32x128xf32>
    %c0_38 = arith.constant 0 : index
    %c0_39 = arith.constant 0 : index
    %189 = vector.load %arg7[%c0_38, %c0_39] : memref<1x128xf32, #tpu.memory_space<vmem>>, vector<1x128xf32>
    %c0_40 = arith.constant 0 : index
    %c0_41 = arith.constant 0 : index
    %190 = vector.load %arg8[%c0_40, %c0_41] : memref<1x128xf32, #tpu.memory_space<vmem>>, vector<1x128xf32>
    %cst_42 = arith.constant dense<0.000000e+00> : vector<64x128xf32>
    %191 = tpu.matmul %186, %187, %cst_42 {dimension_numbers = #tpu.dot_dimension_numbers<[1], [0], [0], [1], [0, 0, 1, 1], [], []>} : vector<64x32xbf16>, vector<32x128xbf16>, vector<64x128xf32> -> vector<64x128xf32>
    %192 = vector.broadcast %189 : vector<1x128xf32> to vector<64x128xf32>
    %193 = arith.addf %191, %192 : vector<64x128xf32>
    %cst_43 = arith.constant 0.000000e+00 : f32
    %194 = vector.broadcast %cst_43 : f32 to vector<8x32xf32>
    %195 = vector.extract_strided_slice %193 {offsets = [0, 0], sizes = [8, 128], strides = [1, 1]} : vector<64x128xf32> to vector<8x128xf32>
    %cst_44 = arith.constant dense<0.000000e+00> : vector<8x128xf32>
    %196 = tpu.matmul %194, %188, %cst_44 {dimension_numbers = #tpu.dot_dimension_numbers<[1], [0], [0], [1], [0, 0, 1, 1], [], []>} : vector<8x32xf32>, vector<32x128xf32>, vector<8x128xf32> -> vector<8x128xf32>
    %197 = vector.broadcast %190 : vector<1x128xf32> to vector<8x128xf32>
    %198 = arith.addf %196, %197 : vector<8x128xf32>
    %199 = arith.addf %195, %198 : vector<8x128xf32>
    %200 = arith.negf %199 : vector<8x128xf32>
    %201 = math.exp %200 : vector<8x128xf32>
    %cst_45 = arith.constant 1.000000e+00 : f32
    %202 = vector.broadcast %cst_45 : f32 to vector<8x128xf32>
    %203 = arith.addf %202, %201 : vector<8x128xf32>
    %204 = arith.divf %202, %203 : vector<8x128xf32>
    %205 = vector.extract_strided_slice %204 {offsets = [0, 0], sizes = [8, 32], strides = [1, 1]} : vector<8x128xf32> to vector<8x32xf32>
    %206 = vector.extract_strided_slice %204 {offsets = [0, 32], sizes = [8, 32], strides = [1, 1]} : vector<8x128xf32> to vector<8x32xf32>
    %207 = vector.extract_strided_slice %195 {offsets = [0, 64], sizes = [8, 32], strides = [1, 1]} : vector<8x128xf32> to vector<8x32xf32>
    %208 = vector.extract_strided_slice %198 {offsets = [0, 64], sizes = [8, 32], strides = [1, 1]} : vector<8x128xf32> to vector<8x32xf32>
    %209 = arith.mulf %205, %208 : vector<8x32xf32>
    %210 = arith.addf %207, %209 : vector<8x32xf32>
    %211 = math.tanh %210 : vector<8x32xf32>
    %cst_46 = arith.constant 1.000000e+00 : f32
    %212 = vector.broadcast %cst_46 : f32 to vector<8x32xf32>
    %213 = arith.subf %212, %206 : vector<8x32xf32>
    %214 = arith.mulf %213, %211 : vector<8x32xf32>
    %215 = arith.mulf %206, %194 : vector<8x32xf32>
    %216 = arith.addf %214, %215 : vector<8x32xf32>
    %217 = vector.extract_strided_slice %193 {offsets = [8, 0], sizes = [8, 128], strides = [1, 1]} : vector<64x128xf32> to vector<8x128xf32>
    %cst_47 = arith.constant dense<0.000000e+00> : vector<8x128xf32>
    %218 = tpu.matmul %216, %188, %cst_47 {dimension_numbers = #tpu.dot_dimension_numbers<[1], [0], [0], [1], [0, 0, 1, 1], [], []>} : vector<8x32xf32>, vector<32x128xf32>, vector<8x128xf32> -> vector<8x128xf32>
    %219 = vector.broadcast %190 : vector<1x128xf32> to vector<8x128xf32>
    %220 = arith.addf %218, %219 : vector<8x128xf32>
    %221 = arith.addf %217, %220 : vector<8x128xf32>
    %222 = arith.negf %221 : vector<8x128xf32>
    %223 = math.exp %222 : vector<8x128xf32>
    %cst_48 = arith.constant 1.000000e+00 : f32
    %224 = vector.broadcast %cst_48 : f32 to vector<8x128xf32>
    %225 = arith.addf %224, %223 : vector<8x128xf32>
    %226 = arith.divf %224, %225 : vector<8x128xf32>
    %227 = vector.extract_strided_slice %226 {offsets = [0, 0], sizes = [8, 32], strides = [1, 1]} : vector<8x128xf32> to vector<8x32xf32>
    %228 = vector.extract_strided_slice %226 {offsets = [0, 32], sizes = [8, 32], strides = [1, 1]} : vector<8x128xf32> to vector<8x32xf32>
    %229 = vector.extract_strided_slice %217 {offsets = [0, 64], sizes = [8, 32], strides = [1, 1]} : vector<8x128xf32> to vector<8x32xf32>
    %230 = vector.extract_strided_slice %220 {offsets = [0, 64], sizes = [8, 32], strides = [1, 1]} : vector<8x128xf32> to vector<8x32xf32>
    %231 = arith.mulf %227, %230 : vector<8x32xf32>
    %232 = arith.addf %229, %231 : vector<8x32xf32>
    %233 = math.tanh %232 : vector<8x32xf32>
    %cst_49 = arith.constant 1.000000e+00 : f32
    %234 = vector.broadcast %cst_49 : f32 to vector<8x32xf32>
    %235 = arith.subf %234, %228 : vector<8x32xf32>
    %236 = arith.mulf %235, %233 : vector<8x32xf32>
    %237 = arith.mulf %228, %216 : vector<8x32xf32>
    %238 = arith.addf %236, %237 : vector<8x32xf32>
    %239 = vector.extract_strided_slice %193 {offsets = [16, 0], sizes = [8, 128], strides = [1, 1]} : vector<64x128xf32> to vector<8x128xf32>
    %cst_50 = arith.constant dense<0.000000e+00> : vector<8x128xf32>
    %240 = tpu.matmul %238, %188, %cst_50 {dimension_numbers = #tpu.dot_dimension_numbers<[1], [0], [0], [1], [0, 0, 1, 1], [], []>} : vector<8x32xf32>, vector<32x128xf32>, vector<8x128xf32> -> vector<8x128xf32>
    %241 = vector.broadcast %190 : vector<1x128xf32> to vector<8x128xf32>
    %242 = arith.addf %240, %241 : vector<8x128xf32>
    %243 = arith.addf %239, %242 : vector<8x128xf32>
    %244 = arith.negf %243 : vector<8x128xf32>
    %245 = math.exp %244 : vector<8x128xf32>
    %cst_51 = arith.constant 1.000000e+00 : f32
    %246 = vector.broadcast %cst_51 : f32 to vector<8x128xf32>
    %247 = arith.addf %246, %245 : vector<8x128xf32>
    %248 = arith.divf %246, %247 : vector<8x128xf32>
    %249 = vector.extract_strided_slice %248 {offsets = [0, 0], sizes = [8, 32], strides = [1, 1]} : vector<8x128xf32> to vector<8x32xf32>
    %250 = vector.extract_strided_slice %248 {offsets = [0, 32], sizes = [8, 32], strides = [1, 1]} : vector<8x128xf32> to vector<8x32xf32>
    %251 = vector.extract_strided_slice %239 {offsets = [0, 64], sizes = [8, 32], strides = [1, 1]} : vector<8x128xf32> to vector<8x32xf32>
    %252 = vector.extract_strided_slice %242 {offsets = [0, 64], sizes = [8, 32], strides = [1, 1]} : vector<8x128xf32> to vector<8x32xf32>
    %253 = arith.mulf %249, %252 : vector<8x32xf32>
    %254 = arith.addf %251, %253 : vector<8x32xf32>
    %255 = math.tanh %254 : vector<8x32xf32>
    %cst_52 = arith.constant 1.000000e+00 : f32
    %256 = vector.broadcast %cst_52 : f32 to vector<8x32xf32>
    %257 = arith.subf %256, %250 : vector<8x32xf32>
    %258 = arith.mulf %257, %255 : vector<8x32xf32>
    %259 = arith.mulf %250, %238 : vector<8x32xf32>
    %260 = arith.addf %258, %259 : vector<8x32xf32>
    %261 = vector.extract_strided_slice %193 {offsets = [24, 0], sizes = [8, 128], strides = [1, 1]} : vector<64x128xf32> to vector<8x128xf32>
    %cst_53 = arith.constant dense<0.000000e+00> : vector<8x128xf32>
    %262 = tpu.matmul %260, %188, %cst_53 {dimension_numbers = #tpu.dot_dimension_numbers<[1], [0], [0], [1], [0, 0, 1, 1], [], []>} : vector<8x32xf32>, vector<32x128xf32>, vector<8x128xf32> -> vector<8x128xf32>
    %263 = vector.broadcast %190 : vector<1x128xf32> to vector<8x128xf32>
    %264 = arith.addf %262, %263 : vector<8x128xf32>
    %265 = arith.addf %261, %264 : vector<8x128xf32>
    %266 = arith.negf %265 : vector<8x128xf32>
    %267 = math.exp %266 : vector<8x128xf32>
    %cst_54 = arith.constant 1.000000e+00 : f32
    %268 = vector.broadcast %cst_54 : f32 to vector<8x128xf32>
    %269 = arith.addf %268, %267 : vector<8x128xf32>
    %270 = arith.divf %268, %269 : vector<8x128xf32>
    %271 = vector.extract_strided_slice %270 {offsets = [0, 0], sizes = [8, 32], strides = [1, 1]} : vector<8x128xf32> to vector<8x32xf32>
    %272 = vector.extract_strided_slice %270 {offsets = [0, 32], sizes = [8, 32], strides = [1, 1]} : vector<8x128xf32> to vector<8x32xf32>
    %273 = vector.extract_strided_slice %261 {offsets = [0, 64], sizes = [8, 32], strides = [1, 1]} : vector<8x128xf32> to vector<8x32xf32>
    %274 = vector.extract_strided_slice %264 {offsets = [0, 64], sizes = [8, 32], strides = [1, 1]} : vector<8x128xf32> to vector<8x32xf32>
    %275 = arith.mulf %271, %274 : vector<8x32xf32>
    %276 = arith.addf %273, %275 : vector<8x32xf32>
    %277 = math.tanh %276 : vector<8x32xf32>
    %cst_55 = arith.constant 1.000000e+00 : f32
    %278 = vector.broadcast %cst_55 : f32 to vector<8x32xf32>
    %279 = arith.subf %278, %272 : vector<8x32xf32>
    %280 = arith.mulf %279, %277 : vector<8x32xf32>
    %281 = arith.mulf %272, %260 : vector<8x32xf32>
    %282 = arith.addf %280, %281 : vector<8x32xf32>
    %283 = vector.extract_strided_slice %193 {offsets = [32, 0], sizes = [8, 128], strides = [1, 1]} : vector<64x128xf32> to vector<8x128xf32>
    %cst_56 = arith.constant dense<0.000000e+00> : vector<8x128xf32>
    %284 = tpu.matmul %282, %188, %cst_56 {dimension_numbers = #tpu.dot_dimension_numbers<[1], [0], [0], [1], [0, 0, 1, 1], [], []>} : vector<8x32xf32>, vector<32x128xf32>, vector<8x128xf32> -> vector<8x128xf32>
    %285 = vector.broadcast %190 : vector<1x128xf32> to vector<8x128xf32>
    %286 = arith.addf %284, %285 : vector<8x128xf32>
    %287 = arith.addf %283, %286 : vector<8x128xf32>
    %288 = arith.negf %287 : vector<8x128xf32>
    %289 = math.exp %288 : vector<8x128xf32>
    %cst_57 = arith.constant 1.000000e+00 : f32
    %290 = vector.broadcast %cst_57 : f32 to vector<8x128xf32>
    %291 = arith.addf %290, %289 : vector<8x128xf32>
    %292 = arith.divf %290, %291 : vector<8x128xf32>
    %293 = vector.extract_strided_slice %292 {offsets = [0, 0], sizes = [8, 32], strides = [1, 1]} : vector<8x128xf32> to vector<8x32xf32>
    %294 = vector.extract_strided_slice %292 {offsets = [0, 32], sizes = [8, 32], strides = [1, 1]} : vector<8x128xf32> to vector<8x32xf32>
    %295 = vector.extract_strided_slice %283 {offsets = [0, 64], sizes = [8, 32], strides = [1, 1]} : vector<8x128xf32> to vector<8x32xf32>
    %296 = vector.extract_strided_slice %286 {offsets = [0, 64], sizes = [8, 32], strides = [1, 1]} : vector<8x128xf32> to vector<8x32xf32>
    %297 = arith.mulf %293, %296 : vector<8x32xf32>
    %298 = arith.addf %295, %297 : vector<8x32xf32>
    %299 = math.tanh %298 : vector<8x32xf32>
    %cst_58 = arith.constant 1.000000e+00 : f32
    %300 = vector.broadcast %cst_58 : f32 to vector<8x32xf32>
    %301 = arith.subf %300, %294 : vector<8x32xf32>
    %302 = arith.mulf %301, %299 : vector<8x32xf32>
    %303 = arith.mulf %294, %282 : vector<8x32xf32>
    %304 = arith.addf %302, %303 : vector<8x32xf32>
    %305 = vector.extract_strided_slice %193 {offsets = [40, 0], sizes = [8, 128], strides = [1, 1]} : vector<64x128xf32> to vector<8x128xf32>
    %cst_59 = arith.constant dense<0.000000e+00> : vector<8x128xf32>
    %306 = tpu.matmul %304, %188, %cst_59 {dimension_numbers = #tpu.dot_dimension_numbers<[1], [0], [0], [1], [0, 0, 1, 1], [], []>} : vector<8x32xf32>, vector<32x128xf32>, vector<8x128xf32> -> vector<8x128xf32>
    %307 = vector.broadcast %190 : vector<1x128xf32> to vector<8x128xf32>
    %308 = arith.addf %306, %307 : vector<8x128xf32>
    %309 = arith.addf %305, %308 : vector<8x128xf32>
    %310 = arith.negf %309 : vector<8x128xf32>
    %311 = math.exp %310 : vector<8x128xf32>
    %cst_60 = arith.constant 1.000000e+00 : f32
    %312 = vector.broadcast %cst_60 : f32 to vector<8x128xf32>
    %313 = arith.addf %312, %311 : vector<8x128xf32>
    %314 = arith.divf %312, %313 : vector<8x128xf32>
    %315 = vector.extract_strided_slice %314 {offsets = [0, 0], sizes = [8, 32], strides = [1, 1]} : vector<8x128xf32> to vector<8x32xf32>
    %316 = vector.extract_strided_slice %314 {offsets = [0, 32], sizes = [8, 32], strides = [1, 1]} : vector<8x128xf32> to vector<8x32xf32>
    %317 = vector.extract_strided_slice %305 {offsets = [0, 64], sizes = [8, 32], strides = [1, 1]} : vector<8x128xf32> to vector<8x32xf32>
    %318 = vector.extract_strided_slice %308 {offsets = [0, 64], sizes = [8, 32], strides = [1, 1]} : vector<8x128xf32> to vector<8x32xf32>
    %319 = arith.mulf %315, %318 : vector<8x32xf32>
    %320 = arith.addf %317, %319 : vector<8x32xf32>
    %321 = math.tanh %320 : vector<8x32xf32>
    %cst_61 = arith.constant 1.000000e+00 : f32
    %322 = vector.broadcast %cst_61 : f32 to vector<8x32xf32>
    %323 = arith.subf %322, %316 : vector<8x32xf32>
    %324 = arith.mulf %323, %321 : vector<8x32xf32>
    %325 = arith.mulf %316, %304 : vector<8x32xf32>
    %326 = arith.addf %324, %325 : vector<8x32xf32>
    %327 = vector.extract_strided_slice %193 {offsets = [48, 0], sizes = [8, 128], strides = [1, 1]} : vector<64x128xf32> to vector<8x128xf32>
    %cst_62 = arith.constant dense<0.000000e+00> : vector<8x128xf32>
    %328 = tpu.matmul %326, %188, %cst_62 {dimension_numbers = #tpu.dot_dimension_numbers<[1], [0], [0], [1], [0, 0, 1, 1], [], []>} : vector<8x32xf32>, vector<32x128xf32>, vector<8x128xf32> -> vector<8x128xf32>
    %329 = vector.broadcast %190 : vector<1x128xf32> to vector<8x128xf32>
    %330 = arith.addf %328, %329 : vector<8x128xf32>
    %331 = arith.addf %327, %330 : vector<8x128xf32>
    %332 = arith.negf %331 : vector<8x128xf32>
    %333 = math.exp %332 : vector<8x128xf32>
    %cst_63 = arith.constant 1.000000e+00 : f32
    %334 = vector.broadcast %cst_63 : f32 to vector<8x128xf32>
    %335 = arith.addf %334, %333 : vector<8x128xf32>
    %336 = arith.divf %334, %335 : vector<8x128xf32>
    %337 = vector.extract_strided_slice %336 {offsets = [0, 0], sizes = [8, 32], strides = [1, 1]} : vector<8x128xf32> to vector<8x32xf32>
    %338 = vector.extract_strided_slice %336 {offsets = [0, 32], sizes = [8, 32], strides = [1, 1]} : vector<8x128xf32> to vector<8x32xf32>
    %339 = vector.extract_strided_slice %327 {offsets = [0, 64], sizes = [8, 32], strides = [1, 1]} : vector<8x128xf32> to vector<8x32xf32>
    %340 = vector.extract_strided_slice %330 {offsets = [0, 64], sizes = [8, 32], strides = [1, 1]} : vector<8x128xf32> to vector<8x32xf32>
    %341 = arith.mulf %337, %340 : vector<8x32xf32>
    %342 = arith.addf %339, %341 : vector<8x32xf32>
    %343 = math.tanh %342 : vector<8x32xf32>
    %cst_64 = arith.constant 1.000000e+00 : f32
    %344 = vector.broadcast %cst_64 : f32 to vector<8x32xf32>
    %345 = arith.subf %344, %338 : vector<8x32xf32>
    %346 = arith.mulf %345, %343 : vector<8x32xf32>
    %347 = arith.mulf %338, %326 : vector<8x32xf32>
    %348 = arith.addf %346, %347 : vector<8x32xf32>
    %349 = vector.extract_strided_slice %193 {offsets = [56, 0], sizes = [8, 128], strides = [1, 1]} : vector<64x128xf32> to vector<8x128xf32>
    %cst_65 = arith.constant dense<0.000000e+00> : vector<8x128xf32>
    %350 = tpu.matmul %348, %188, %cst_65 {dimension_numbers = #tpu.dot_dimension_numbers<[1], [0], [0], [1], [0, 0, 1, 1], [], []>} : vector<8x32xf32>, vector<32x128xf32>, vector<8x128xf32> -> vector<8x128xf32>
    %351 = vector.broadcast %190 : vector<1x128xf32> to vector<8x128xf32>
    %352 = arith.addf %350, %351 : vector<8x128xf32>
    %353 = arith.addf %349, %352 : vector<8x128xf32>
    %354 = arith.negf %353 : vector<8x128xf32>
    %355 = math.exp %354 : vector<8x128xf32>
    %cst_66 = arith.constant 1.000000e+00 : f32
    %356 = vector.broadcast %cst_66 : f32 to vector<8x128xf32>
    %357 = arith.addf %356, %355 : vector<8x128xf32>
    %358 = arith.divf %356, %357 : vector<8x128xf32>
    %359 = vector.extract_strided_slice %358 {offsets = [0, 0], sizes = [8, 32], strides = [1, 1]} : vector<8x128xf32> to vector<8x32xf32>
    %360 = vector.extract_strided_slice %358 {offsets = [0, 32], sizes = [8, 32], strides = [1, 1]} : vector<8x128xf32> to vector<8x32xf32>
    %361 = vector.extract_strided_slice %349 {offsets = [0, 64], sizes = [8, 32], strides = [1, 1]} : vector<8x128xf32> to vector<8x32xf32>
    %362 = vector.extract_strided_slice %352 {offsets = [0, 64], sizes = [8, 32], strides = [1, 1]} : vector<8x128xf32> to vector<8x32xf32>
    %363 = arith.mulf %359, %362 : vector<8x32xf32>
    %364 = arith.addf %361, %363 : vector<8x32xf32>
    %365 = math.tanh %364 : vector<8x32xf32>
    %cst_67 = arith.constant 1.000000e+00 : f32
    %366 = vector.broadcast %cst_67 : f32 to vector<8x32xf32>
    %367 = arith.subf %366, %360 : vector<8x32xf32>
    %368 = arith.mulf %367, %365 : vector<8x32xf32>
    %369 = arith.mulf %360, %348 : vector<8x32xf32>
    %370 = arith.addf %368, %369 : vector<8x32xf32>
    %371 = tpu.concatenate %216, %238, %260, %282, %304, %326, %348, %370 in 0 : vector<8x32xf32>, vector<8x32xf32>, vector<8x32xf32>, vector<8x32xf32>, vector<8x32xf32>, vector<8x32xf32>, vector<8x32xf32>, vector<8x32xf32> -> vector<64x32xf32>
    %372 = arith.truncf %371 : vector<64x32xf32> to vector<64x32xbf16>
    %c0_68 = arith.constant 0 : index
    %c0_69 = arith.constant 0 : index
    %373 = vector.load %arg9[%c0_68, %c0_69] : memref<32x128xbf16, #tpu.memory_space<vmem>>, vector<32x128xbf16>
    %c0_70 = arith.constant 0 : index
    %c0_71 = arith.constant 0 : index
    %374 = vector.load %arg10[%c0_70, %c0_71] : memref<1x128xf32, #tpu.memory_space<vmem>>, vector<1x128xf32>
    %cst_72 = arith.constant dense<0.000000e+00> : vector<64x128xf32>
    %375 = tpu.matmul %372, %373, %cst_72 {dimension_numbers = #tpu.dot_dimension_numbers<[1], [0], [0], [1], [0, 0, 1, 1], [], []>} : vector<64x32xbf16>, vector<32x128xbf16>, vector<64x128xf32> -> vector<64x128xf32>
    %376 = vector.broadcast %374 : vector<1x128xf32> to vector<64x128xf32>
    %377 = arith.addf %375, %376 : vector<64x128xf32>
    %cst_73 = arith.constant 0.000000e+00 : f32
    %378 = vector.broadcast %cst_73 : f32 to vector<64x128xf32>
    %379 = arith.maximumf %377, %378 : vector<64x128xf32>
    %380 = arith.truncf %379 : vector<64x128xf32> to vector<64x128xbf16>
    %c0_74 = arith.constant 0 : index
    %c0_75 = arith.constant 0 : index
    %381 = vector.load %arg11[%c0_74, %c0_75] : memref<128x128xbf16, #tpu.memory_space<vmem>>, vector<128x128xbf16>
    %c0_76 = arith.constant 0 : index
    %c0_77 = arith.constant 0 : index
    %382 = vector.load %arg12[%c0_76, %c0_77] : memref<1x128xf32, #tpu.memory_space<vmem>>, vector<1x128xf32>
    %cst_78 = arith.constant dense<0.000000e+00> : vector<64x128xf32>
    %383 = tpu.matmul %380, %381, %cst_78 {dimension_numbers = #tpu.dot_dimension_numbers<[1], [0], [0], [1], [0, 0, 1, 1], [], []>} : vector<64x128xbf16>, vector<128x128xbf16>, vector<64x128xf32> -> vector<64x128xf32>
    %384 = vector.broadcast %382 : vector<1x128xf32> to vector<64x128xf32>
    %385 = arith.addf %383, %384 : vector<64x128xf32>
    %cst_79 = arith.constant 0.000000e+00 : f32
    %386 = vector.broadcast %cst_79 : f32 to vector<64x128xf32>
    %387 = arith.maximumf %385, %386 : vector<64x128xf32>
    %388 = arith.truncf %387 : vector<64x128xf32> to vector<64x128xbf16>
    %c0_80 = arith.constant 0 : index
    %c0_81 = arith.constant 0 : index
    %389 = vector.load %arg13[%c0_80, %c0_81] : memref<128x128xbf16, #tpu.memory_space<vmem>>, vector<128x128xbf16>
    %c0_82 = arith.constant 0 : index
    %c0_83 = arith.constant 0 : index
    %390 = vector.load %arg14[%c0_82, %c0_83] : memref<1x128xf32, #tpu.memory_space<vmem>>, vector<1x128xf32>
    %cst_84 = arith.constant dense<0.000000e+00> : vector<64x128xf32>
    %391 = tpu.matmul %388, %389, %cst_84 {dimension_numbers = #tpu.dot_dimension_numbers<[1], [0], [0], [1], [0, 0, 1, 1], [], []>} : vector<64x128xbf16>, vector<128x128xbf16>, vector<64x128xf32> -> vector<64x128xf32>
    %392 = vector.broadcast %390 : vector<1x128xf32> to vector<64x128xf32>
    %393 = arith.addf %391, %392 : vector<64x128xf32>
    %cst_85 = arith.constant 0.000000e+00 : f32
    %394 = vector.broadcast %cst_85 : f32 to vector<64x128xf32>
    %395 = arith.maximumf %393, %394 : vector<64x128xf32>
    %396 = arith.truncf %395 : vector<64x128xf32> to vector<64x128xbf16>
    %c0_86 = arith.constant 0 : index
    %c0_87 = arith.constant 0 : index
    %397 = vector.load %arg15[%c0_86, %c0_87] : memref<128x128xbf16, #tpu.memory_space<vmem>>, vector<128x128xbf16>
    %c0_88 = arith.constant 0 : index
    %c0_89 = arith.constant 0 : index
    %398 = vector.load %arg16[%c0_88, %c0_89] : memref<1x128xf32, #tpu.memory_space<vmem>>, vector<1x128xf32>
    %cst_90 = arith.constant dense<0.000000e+00> : vector<64x128xf32>
    %399 = tpu.matmul %396, %397, %cst_90 {dimension_numbers = #tpu.dot_dimension_numbers<[1], [0], [0], [1], [0, 0, 1, 1], [], []>} : vector<64x128xbf16>, vector<128x128xbf16>, vector<64x128xf32> -> vector<64x128xf32>
    %400 = vector.broadcast %398 : vector<1x128xf32> to vector<64x128xf32>
    %401 = arith.addf %399, %400 : vector<64x128xf32>
    %cst_91 = arith.constant 0.000000e+00 : f32
    %402 = vector.broadcast %cst_91 : f32 to vector<64x128xf32>
    %403 = arith.maximumf %401, %402 : vector<64x128xf32>
    %404 = arith.truncf %403 : vector<64x128xf32> to vector<64x128xbf16>
    %c0_92 = arith.constant 0 : index
    %c0_93 = arith.constant 0 : index
    %405 = vector.load %arg17[%c0_92, %c0_93] : memref<128x128xbf16, #tpu.memory_space<vmem>>, vector<128x128xbf16>
    %c0_94 = arith.constant 0 : index
    %c0_95 = arith.constant 0 : index
    %406 = vector.load %arg18[%c0_94, %c0_95] : memref<1x128xf32, #tpu.memory_space<vmem>>, vector<1x128xf32>
    %cst_96 = arith.constant dense<0.000000e+00> : vector<64x128xf32>
    %407 = tpu.matmul %404, %405, %cst_96 {dimension_numbers = #tpu.dot_dimension_numbers<[1], [0], [0], [1], [0, 0, 1, 1], [], []>} : vector<64x128xbf16>, vector<128x128xbf16>, vector<64x128xf32> -> vector<64x128xf32>
    %408 = vector.broadcast %406 : vector<1x128xf32> to vector<64x128xf32>
    %409 = arith.addf %407, %408 : vector<64x128xf32>
    %cst_97 = arith.constant 0.000000e+00 : f32
    %410 = vector.broadcast %cst_97 : f32 to vector<64x128xf32>
    %411 = arith.maximumf %409, %410 : vector<64x128xf32>
    %412 = arith.truncf %411 : vector<64x128xf32> to vector<64x128xbf16>
    %c0_98 = arith.constant 0 : index
    %c0_99 = arith.constant 0 : index
    %413 = vector.load %arg19[%c0_98, %c0_99] : memref<128x128xbf16, #tpu.memory_space<vmem>>, vector<128x128xbf16>
    %c0_100 = arith.constant 0 : index
    %c0_101 = arith.constant 0 : index
    %414 = vector.load %arg20[%c0_100, %c0_101] : memref<1x128xf32, #tpu.memory_space<vmem>>, vector<1x128xf32>
    %cst_102 = arith.constant dense<0.000000e+00> : vector<64x128xf32>
    %415 = tpu.matmul %412, %413, %cst_102 {dimension_numbers = #tpu.dot_dimension_numbers<[1], [0], [0], [1], [0, 0, 1, 1], [], []>} : vector<64x128xbf16>, vector<128x128xbf16>, vector<64x128xf32> -> vector<64x128xf32>
    %416 = vector.broadcast %414 : vector<1x128xf32> to vector<64x128xf32>
    %417 = arith.addf %415, %416 : vector<64x128xf32>
    %418 = arith.negf %417 : vector<64x128xf32>
    %419 = math.exp %418 : vector<64x128xf32>
    %cst_103 = arith.constant 1.000000e+00 : f32
    %420 = vector.broadcast %cst_103 : f32 to vector<64x128xf32>
    %421 = arith.addf %420, %419 : vector<64x128xf32>
    %422 = arith.divf %420, %421 : vector<64x128xf32>
    %c0_104 = arith.constant 0 : index
    %c0_105 = arith.constant 0 : index
    %423 = vector.load %arg21[%c0_104, %c0_105] : memref<64x128xf32, #tpu.memory_space<vmem>>, vector<64x128xf32>
    tpu.vector_store %arg21[%c0_104, %c0_105], %422 {strides = array<i32>} : memref<64x128xf32, #tpu.memory_space<vmem>>, vector<64x128xf32>,
    return
  }
}

</mosaic_0001>

<llo_original>
// kernel: tpu_custom_call.1
$region0: #{tpu_custom_call.1}
  #allocation0 [shape = 'u32[]', space=smem, size = 0x4, offset = 0x4, fixed_abs, tag = 'smem constant byte address 0x4 - core index']
  #allocation1 [shape = 'u32[72,128]{1,0:T(1,128)}', space=vmem, size = 0x9000, scoped, tag = 'internal scratch']
  %s0 = inlined_call_operand.vmem [shape: bf16[64,16], index: 0, kind: input, shape index: {}]
  %s1 = inlined_call_operand.hbm [shape: bf16[16,128], index: 1, kind: input, shape index: {}]
  %s2 = inlined_call_operand.vmem [shape: f32[32,128], index: 2, kind: input, shape index: {}]
  %s3 = inlined_call_operand.hbm [shape: f32[1,128], index: 3, kind: input, shape index: {}]
  %s4 = inlined_call_operand.hbm [shape: f32[1,128], index: 4, kind: input, shape index: {}]
  %s5 = inlined_call_operand.hbm [shape: bf16[32,128], index: 5, kind: input, shape index: {}]
  %s6 = inlined_call_operand.hbm [shape: f32[32,128], index: 6, kind: input, shape index: {}]
  %s7 = inlined_call_operand.hbm [shape: f32[1,128], index: 7, kind: input, shape index: {}]
  %s8 = inlined_call_operand.hbm [shape: f32[1,128], index: 8, kind: input, shape index: {}]
  %s9 = inlined_call_operand.vmem [shape: bf16[32,128], index: 9, kind: input, shape index: {}]
  %s10 = inlined_call_operand.vmem [shape: f32[1,128], index: 10, kind: input, shape index: {}]
  %s11 = inlined_call_operand.hbm [shape: bf16[128,128], index: 11, kind: input, shape index: {}]
  %s12 = inlined_call_operand.vmem [shape: f32[1,128], index: 12, kind: input, shape index: {}]
  %s13 = inlined_call_operand.hbm [shape: bf16[128,128], index: 13, kind: input, shape index: {}]
  %s14 = inlined_call_operand.vmem [shape: f32[1,128], index: 14, kind: input, shape index: {}]
  %s15 = inlined_call_operand.hbm [shape: bf16[128,128], index: 15, kind: input, shape index: {}]
  %s16 = inlined_call_operand.vmem [shape: f32[1,128], index: 16, kind: input, shape index: {}]
  %s17 = inlined_call_operand.hbm [shape: bf16[128,128], index: 17, kind: input, shape index: {}]
  %s18 = inlined_call_operand.vmem [shape: f32[1,128], index: 18, kind: input, shape index: {}]
  %s19 = inlined_call_operand.hbm [shape: bf16[128,128], index: 19, kind: input, shape index: {}]
  %s20 = inlined_call_operand.vmem [shape: f32[1,128], index: 20, kind: input, shape index: {}]
  %s21 = inlined_call_operand.hbm [shape: f32[64,128], index: 21, kind: output, shape index: {}]
  %s22 = sld [smem:[#allocation0]]
  $region142: #{tpu_custom_call.1} parent=0
    _
  %s24 = ssub.s32 1, %s22
  %s25 = scalar_select 0, %s24, %s22
  $region1: #{tpu_custom_call.1} parent=0
    #allocation2 [shape = 'u8[4096]{0}', space=vmem, size = 0x1000, scoped, tag = 'input window, operand 1, single buffered']
    #allocation3 [shape = 's32[1]{0}', space=sflag, size = 0x4, scoped, tag = 'scoped memory for tpu_custom_call.1']
    #allocation4 [shape = 's32[1]{0}', space=sflag, size = 0x4, scoped, tag = 'scoped memory for tpu_custom_call.1']
    #allocation5 [shape = 'u8[512]{0}', space=vmem, size = 0x400, scoped, tag = 'input window, operand 3, single buffered']
    #allocation6 [shape = 's32[1]{0}', space=sflag, size = 0x4, scoped, tag = 'scoped memory for tpu_custom_call.1']
    #allocation7 [shape = 'u8[512]{0}', space=vmem, size = 0x400, scoped, tag = 'input window, operand 4, single buffered']
    #allocation8 [shape = 'u8[8192]{0}', space=vmem, size = 0x2000, scoped, tag = 'input window, operand 5, single buffered']
    #allocation9 [shape = 's32[1]{0}', space=sflag, size = 0x4, scoped, tag = 'scoped memory for tpu_custom_call.1']
    #allocation10 [shape = 'u8[16384]{0}', space=vmem, size = 0x4000, scoped, tag = 'input window, operand 6, single buffered']
    #allocation11 [shape = 'u8[512]{0}', space=vmem, size = 0x400, scoped, tag = 'input window, operand 7, single buffered']
    #allocation12 [shape = 's32[1]{0}', space=sflag, size = 0x4, scoped, tag = 'scoped memory for tpu_custom_call.1']
    #allocation13 [shape = 'u8[512]{0}', space=vmem, size = 0x400, scoped, tag = 'input window, operand 8, single buffered']
    #allocation14 [shape = 'u8[32768]{0}', space=vmem, size = 0x8000, scoped, tag = 'input window, operand 11, single buffered']
    #allocation15 [shape = 's32[1]{0}', space=sflag, size = 0x4, scoped, tag = 'scoped memory for tpu_custom_call.1']
    #allocation16 [shape = 'u8[32768]{0}', space=vmem, size = 0x8000, scoped, tag = 'input window, operand 13, single buffered']
    #allocation17 [shape = 'u8[32768]{0}', space=vmem, size = 0x8000, scoped, tag = 'input window, operand 15, single buffered']
    #allocation18 [shape = 's32[1]{0}', space=sflag, size = 0x4, scoped, tag = 'scoped memory for tpu_custom_call.1']
    #allocation19 [shape = 'u8[32768]{0}', space=vmem, size = 0x8000, scoped, tag = 'input window, operand 17, single buffered']
    #allocation20 [shape = 'u8[32768]{0}', space=vmem, size = 0x8000, scoped, tag = 'input window, operand 19, single buffered']
    #allocation21 [shape = 's32[1]{0}', space=sflag, size = 0x4, scoped, tag = 'scoped memory for tpu_custom_call.1']
    #allocation22 [shape = 'u8[32768]{0}', space=vmem, size = 0x8000, scoped, tag = 'output window, operand 0, single buffered']
    %26 = vsyncpa [#allocation3], 0
    %27 = vsyncpa [#allocation6], 0
    %28 = vsyncpa [#allocation9], 0
    %29 = vsyncpa [#allocation12], 0
    %30 = vsyncpa [#allocation15], 0
    %31 = vsyncpa [#allocation18], 0
    %32 = vsyncpa [#allocation21], 0
    %33 = vsyncpa [#allocation4], 0
    // Predicated region
    $region2: #{tpu_custom_call.1} parent=1 // pred_check
      _
    $region3: #{tpu_custom_call.1} parent=1 // pred_check_branch
      %35 = sbr.rel (0) target = $region5
    $region4: #{tpu_custom_call.1} parent=1 // pred_region
      _
    $region5: #{tpu_custom_call.1} parent=1 // pred_fallthru
      _
    // Predicated region
    $region6: #{tpu_custom_call.1} parent=1 // pred_check
      _
    $region7: #{tpu_custom_call.1} parent=1 // pred_check_branch
      %37 = sbr.rel (0) target = $region9
    $region8: #{tpu_custom_call.1} parent=1 // pred_region
      %39 = vsyncadd [#allocation3], 0
      %s40 = sshll.u32 %s1, 4
      %s41 = int_to_ptr.hbm [resolvable:$true] %s40
      %s42 = sshll.u32 [#allocation2], 4
      %s43 = int_to_ptr.vmem [resolvable:$true] %s42
      %48 = dma.hbm_to_vmem [thread:$0]  %s41, 128, %s43, [#allocation3], 64, 64, 4
    $region9: #{tpu_custom_call.1} parent=1 // pred_fallthru
      _
    // Predicated region
    $region10: #{tpu_custom_call.1} parent=1 // pred_check
      _
    $region11: #{tpu_custom_call.1} parent=1 // pred_check_branch
      %50 = sbr.rel (0) target = $region13
    $region12: #{tpu_custom_call.1} parent=1 // pred_region
      _
    $region13: #{tpu_custom_call.1} parent=1 // pred_fallthru
      _
    // Predicated region
    $region14: #{tpu_custom_call.1} parent=1 // pred_check
      _
    $region15: #{tpu_custom_call.1} parent=1 // pred_check_branch
      %52 = sbr.rel (0) target = $region17
    $region16: #{tpu_custom_call.1} parent=1 // pred_region
      %54 = vsyncadd [#allocation6], 0
      %s56 = sshll.u32 %s3, 4
      %s57 = int_to_ptr.hbm [resolvable:$true] %s56
      %s58 = sshll.u32 [#allocation5], 4
      %s59 = int_to_ptr.vmem [resolvable:$true] %s58
      %61 = dma.hbm_to_vmem [thread:$0]  %s57, 16, %s59, [#allocation6]
    $region17: #{tpu_custom_call.1} parent=1 // pred_fallthru
      _
    // Predicated region
    $region18: #{tpu_custom_call.1} parent=1 // pred_check
      _
    $region19: #{tpu_custom_call.1} parent=1 // pred_check_branch
      %63 = sbr.rel (0) target = $region21
    $region20: #{tpu_custom_call.1} parent=1 // pred_region
      %65 = vsyncadd [#allocation6], 0
      %s67 = sshll.u32 %s4, 4
      %s68 = int_to_ptr.hbm [resolvable:$true] %s67
      %s69 = sshll.u32 [#allocation7], 4
      %s70 = int_to_ptr.vmem [resolvable:$true] %s69
      %72 = dma.hbm_to_vmem [thread:$0]  %s68, 16, %s70, [#allocation6]
    $region21: #{tpu_custom_call.1} parent=1 // pred_fallthru
      _
    // Predicated region
    $region22: #{tpu_custom_call.1} parent=1 // pred_check
      _
    $region23: #{tpu_custom_call.1} parent=1 // pred_check_branch
      %74 = sbr.rel (0) target = $region25
    $region24: #{tpu_custom_call.1} parent=1 // pred_region
      %76 = vsyncadd [#allocation9], 0
      %s77 = sshll.u32 %s5, 4
      %s78 = int_to_ptr.hbm [resolvable:$true] %s77
      %s79 = sshll.u32 [#allocation8], 4
      %s80 = int_to_ptr.vmem [resolvable:$true] %s79
      %85 = dma.hbm_to_vmem [thread:$0]  %s78, 256, %s80, [#allocation9], 64, 64, 4
    $region25: #{tpu_custom_call.1} parent=1 // pred_fallthru
      _
    // Predicated region
    $region26: #{tpu_custom_call.1} parent=1 // pred_check
      _
    $region27: #{tpu_custom_call.1} parent=1 // pred_check_branch
      %87 = sbr.rel (0) target = $region29
    $region28: #{tpu_custom_call.1} parent=1 // pred_region
      %89 = vsyncadd [#allocation9], 0
      %s90 = sshll.u32 %s6, 4
      %s91 = int_to_ptr.hbm [resolvable:$true] %s90
      %s92 = sshll.u32 [#allocation10], 4
      %s93 = int_to_ptr.vmem [resolvable:$true] %s92
      %98 = dma.hbm_to_vmem [thread:$0]  %s91, 512, %s93, [#allocation9], 128, 128, 8
    $region29: #{tpu_custom_call.1} parent=1 // pred_fallthru
      _
    // Predicated region
    $region30: #{tpu_custom_call.1} parent=1 // pred_check
      _
    $region31: #{tpu_custom_call.1} parent=1 // pred_check_branch
      %100 = sbr.rel (0) target = $region33
    $region32: #{tpu_custom_call.1} parent=1 // pred_region
      %102 = vsyncadd [#allocation12], 0
      %s104 = sshll.u32 %s7, 4
      %s105 = int_to_ptr.hbm [resolvable:$true] %s104
      %s106 = sshll.u32 [#allocation11], 4
      %s107 = int_to_ptr.vmem [resolvable:$true] %s106
      %109 = dma.hbm_to_vmem [thread:$0]  %s105, 16, %s107, [#allocation12]
    $region33: #{tpu_custom_call.1} parent=1 // pred_fallthru
      _
    // Predicated region
    $region34: #{tpu_custom_call.1} parent=1 // pred_check
      _
    $region35: #{tpu_custom_call.1} parent=1 // pred_check_branch
      %111 = sbr.rel (0) target = $region37
    $region36: #{tpu_custom_call.1} parent=1 // pred_region
      %113 = vsyncadd [#allocation12], 0
      %s115 = sshll.u32 %s8, 4
      %s116 = int_to_ptr.hbm [resolvable:$true] %s115
      %s117 = sshll.u32 [#allocation13], 4
      %s118 = int_to_ptr.vmem [resolvable:$true] %s117
      %120 = dma.hbm_to_vmem [thread:$0]  %s116, 16, %s118, [#allocation12]
    $region37: #{tpu_custom_call.1} parent=1 // pred_fallthru
      _
    // Predicated region
    $region38: #{tpu_custom_call.1} parent=1 // pred_check
      _
    $region39: #{tpu_custom_call.1} parent=1 // pred_check_branch
      %122 = sbr.rel (0) target = $region41
    $region40: #{tpu_custom_call.1} parent=1 // pred_region
      _
    $region41: #{tpu_custom_call.1} parent=1 // pred_fallthru
      _
    // Predicated region
    $region42: #{tpu_custom_call.1} parent=1 // pred_check
      _
    $region43: #{tpu_custom_call.1} parent=1 // pred_check_branch
      %124 = sbr.rel (0) target = $region45
    $region44: #{tpu_custom_call.1} parent=1 // pred_region
      _
    $region45: #{tpu_custom_call.1} parent=1 // pred_fallthru
      _
    // Predicated region
    $region46: #{tpu_custom_call.1} parent=1 // pred_check
      _
    $region47: #{tpu_custom_call.1} parent=1 // pred_check_branch
      %126 = sbr.rel (0) target = $region49
    $region48: #{tpu_custom_call.1} parent=1 // pred_region
      %128 = vsyncadd [#allocation15], 0
      %s129 = sshll.u32 %s11, 4
      %s130 = int_to_ptr.hbm [resolvable:$true] %s129
      %s131 = sshll.u32 [#allocation14], 4
      %s132 = int_to_ptr.vmem [resolvable:$true] %s131
      %137 = dma.hbm_to_vmem [thread:$0]  %s130, 1024, %s132, [#allocation15], 64, 64, 4
    $region49: #{tpu_custom_call.1} parent=1 // pred_fallthru
      _
    // Predicated region
    $region50: #{tpu_custom_call.1} parent=1 // pred_check
      _
    $region51: #{tpu_custom_call.1} parent=1 // pred_check_branch
      %139 = sbr.rel (0) target = $region53
    $region52: #{tpu_custom_call.1} parent=1 // pred_region
      _
    $region53: #{tpu_custom_call.1} parent=1 // pred_fallthru
      _
    // Predicated region
    $region54: #{tpu_custom_call.1} parent=1 // pred_check
      _
    $region55: #{tpu_custom_call.1} parent=1 // pred_check_branch
      %141 = sbr.rel (0) target = $region57
    $region56: #{tpu_custom_call.1} parent=1 // pred_region
      %143 = vsyncadd [#allocation15], 0
      %s144 = sshll.u32 %s13, 4
      %s145 = int_to_ptr.hbm [resolvable:$true] %s144
      %s146 = sshll.u32 [#allocation16], 4
      %s147 = int_to_ptr.vmem [resolvable:$true] %s146
      %152 = dma.hbm_to_vmem [thread:$0]  %s145, 1024, %s147, [#allocation15], 64, 64, 4
    $region57: #{tpu_custom_call.1} parent=1 // pred_fallthru
      _
    // Predicated region
    $region58: #{tpu_custom_call.1} parent=1 // pred_check
      _
    $region59: #{tpu_custom_call.1} parent=1 // pred_check_branch
      %154 = sbr.rel (0) target = $region61
    $region60: #{tpu_custom_call.1} parent=1 // pred_region
      _
    $region61: #{tpu_custom_call.1} parent=1 // pred_fallthru
      _
    // Predicated region
    $region62: #{tpu_custom_call.1} parent=1 // pred_check
      _
    $region63: #{tpu_custom_call.1} parent=1 // pred_check_branch
      %156 = sbr.rel (0) target = $region65
    $region64: #{tpu_custom_call.1} parent=1 // pred_region
      %158 = vsyncadd [#allocation18], 0
      %s159 = sshll.u32 %s15, 4
      %s160 = int_to_ptr.hbm [resolvable:$true] %s159
      %s161 = sshll.u32 [#allocation17], 4
      %s162 = int_to_ptr.vmem [resolvable:$true] %s161
      %167 = dma.hbm_to_vmem [thread:$0]  %s160, 1024, %s162, [#allocation18], 64, 64, 4
    $region65: #{tpu_custom_call.1} parent=1 // pred_fallthru
      _
    // Predicated region
    $region66: #{tpu_custom_call.1} parent=1 // pred_check
      _
    $region67: #{tpu_custom_call.1} parent=1 // pred_check_branch
      %169 = sbr.rel (0) target = $region69
    $region68: #{tpu_custom_call.1} parent=1 // pred_region
      _
    $region69: #{tpu_custom_call.1} parent=1 // pred_fallthru
      _
    // Predicated region
    $region70: #{tpu_custom_call.1} parent=1 // pred_check
      _
    $region71: #{tpu_custom_call.1} parent=1 // pred_check_branch
      %171 = sbr.rel (0) target = $region73
    $region72: #{tpu_custom_call.1} parent=1 // pred_region
      %173 = vsyncadd [#allocation18], 0
      %s174 = sshll.u32 %s17, 4
      %s175 = int_to_ptr.hbm [resolvable:$true] %s174
      %s176 = sshll.u32 [#allocation19], 4
      %s177 = int_to_ptr.vmem [resolvable:$true] %s176
      %182 = dma.hbm_to_vmem [thread:$0]  %s175, 1024, %s177, [#allocation18], 64, 64, 4
    $region73: #{tpu_custom_call.1} parent=1 // pred_fallthru
      _
    // Predicated region
    $region74: #{tpu_custom_call.1} parent=1 // pred_check
      _
    $region75: #{tpu_custom_call.1} parent=1 // pred_check_branch
      %184 = sbr.rel (0) target = $region77
    $region76: #{tpu_custom_call.1} parent=1 // pred_region
      _
    $region77: #{tpu_custom_call.1} parent=1 // pred_fallthru
      _
    // Predicated region
    $region78: #{tpu_custom_call.1} parent=1 // pred_check
      _
    $region79: #{tpu_custom_call.1} parent=1 // pred_check_branch
      %186 = sbr.rel (0) target = $region81
    $region80: #{tpu_custom_call.1} parent=1 // pred_region
      %188 = vsyncadd [#allocation21], 0
      %s189 = sshll.u32 %s19, 4
      %s190 = int_to_ptr.hbm [resolvable:$true] %s189
      %s191 = sshll.u32 [#allocation20], 4
      %s192 = int_to_ptr.vmem [resolvable:$true] %s191
      %197 = dma.hbm_to_vmem [thread:$0]  %s190, 1024, %s192, [#allocation21], 64, 64, 4
    $region81: #{tpu_custom_call.1} parent=1 // pred_fallthru
      _
    // Predicated region
    $region82: #{tpu_custom_call.1} parent=1 // pred_check
      _
    $region83: #{tpu_custom_call.1} parent=1 // pred_check_branch
      %199 = sbr.rel (0) target = $region85
    $region84: #{tpu_custom_call.1} parent=1 // pred_region
      _
    $region85: #{tpu_custom_call.1} parent=1 // pred_fallthru
      _
    // Predicated region
    $region86: #{tpu_custom_call.1} parent=1 // pred_check
      _
    $region87: #{tpu_custom_call.1} parent=1 // pred_check_branch
      %201 = sbr.rel (0) target = $region89
    $region88: #{tpu_custom_call.1} parent=1 // pred_region
      %203 = dma.done [#allocation3], 128
    $region89: #{tpu_custom_call.1} parent=1 // pred_fallthru
      _
    // Predicated region
    $region90: #{tpu_custom_call.1} parent=1 // pred_check
      _
    $region91: #{tpu_custom_call.1} parent=1 // pred_check_branch
      %205 = sbr.rel (0) target = $region93
    $region92: #{tpu_custom_call.1} parent=1 // pred_region
      %207 = dma.done [#allocation6], 16
    $region93: #{tpu_custom_call.1} parent=1 // pred_fallthru
      _
    // Predicated region
    $region94: #{tpu_custom_call.1} parent=1 // pred_check
      _
    $region95: #{tpu_custom_call.1} parent=1 // pred_check_branch
      %209 = sbr.rel (0) target = $region97
    $region96: #{tpu_custom_call.1} parent=1 // pred_region
      %211 = dma.done [#allocation6], 16
    $region97: #{tpu_custom_call.1} parent=1 // pred_fallthru
      _
    // Predicated region
    $region98: #{tpu_custom_call.1} parent=1 // pred_check
      _
    $region99: #{tpu_custom_call.1} parent=1 // pred_check_branch
      %213 = sbr.rel (0) target = $region101
    $region100: #{tpu_custom_call.1} parent=1 // pred_region
      %215 = dma.done [#allocation9], 256
    $region101: #{tpu_custom_call.1} parent=1 // pred_fallthru
      _
    // Predicated region
    $region102: #{tpu_custom_call.1} parent=1 // pred_check
      _
    $region103: #{tpu_custom_call.1} parent=1 // pred_check_branch
      %217 = sbr.rel (0) target = $region105
    $region104: #{tpu_custom_call.1} parent=1 // pred_region
      %219 = dma.done [#allocation9], 512
    $region105: #{tpu_custom_call.1} parent=1 // pred_fallthru
      _
    // Predicated region
    $region106: #{tpu_custom_call.1} parent=1 // pred_check
      _
    $region107: #{tpu_custom_call.1} parent=1 // pred_check_branch
      %221 = sbr.rel (0) target = $region109
    $region108: #{tpu_custom_call.1} parent=1 // pred_region
      %223 = dma.done [#allocation12], 16
    $region109: #{tpu_custom_call.1} parent=1 // pred_fallthru
      _
    // Predicated region
    $region110: #{tpu_custom_call.1} parent=1 // pred_check
      _
    $region111: #{tpu_custom_call.1} parent=1 // pred_check_branch
      %225 = sbr.rel (0) target = $region113
    $region112: #{tpu_custom_call.1} parent=1 // pred_region
      %227 = dma.done [#allocation12], 16
    $region113: #{tpu_custom_call.1} parent=1 // pred_fallthru
      _
    // Predicated region
    $region114: #{tpu_custom_call.1} parent=1 // pred_check
      _
    $region115: #{tpu_custom_call.1} parent=1 // pred_check_branch
      %229 = sbr.rel (0) target = $region117
    $region116: #{tpu_custom_call.1} parent=1 // pred_region
      %231 = dma.done [#allocation15], 1024
    $region117: #{tpu_custom_call.1} parent=1 // pred_fallthru
      _
    // Predicated region
    $region118: #{tpu_custom_call.1} parent=1 // pred_check
      _
    $region119: #{tpu_custom_call.1} parent=1 // pred_check_branch
      %233 = sbr.rel (0) target = $region121
    $region120: #{tpu_custom_call.1} parent=1 // pred_region
      %235 = dma.done [#allocation15], 1024
    $region121: #{tpu_custom_call.1} parent=1 // pred_fallthru
      _
    // Predicated region
    $region122: #{tpu_custom_call.1} parent=1 // pred_check
      _
    $region123: #{tpu_custom_call.1} parent=1 // pred_check_branch
      %237 = sbr.rel (0) target = $region125
    $region124: #{tpu_custom_call.1} parent=1 // pred_region
      %239 = dma.done [#allocation18], 1024
    $region125: #{tpu_custom_call.1} parent=1 // pred_fallthru
      _
    // Predicated region
    $region126: #{tpu_custom_call.1} parent=1 // pred_check
      _
    $region127: #{tpu_custom_call.1} parent=1 // pred_check_branch
      %241 = sbr.rel (0) target = $region129
    $region128: #{tpu_custom_call.1} parent=1 // pred_region
      %243 = dma.done [#allocation18], 1024
    $region129: #{tpu_custom_call.1} parent=1 // pred_fallthru
      _
    // Predicated region
    $region130: #{tpu_custom_call.1} parent=1 // pred_check
      _
    $region131: #{tpu_custom_call.1} parent=1 // pred_check_branch
      %245 = sbr.rel (0) target = $region133
    $region132: #{tpu_custom_call.1} parent=1 // pred_region
      %247 = dma.done [#allocation21], 1024
    $region133: #{tpu_custom_call.1} parent=1 // pred_fallthru
      _
    %v249 = vld [vmem:[%s0] sm:$0xf]
    %v250 = vld [vmem:[%s0 + $0x4] sm:$0xf]
    %v251 = vld [vmem:[%s0 + $0x8] sm:$0xf]
    %v252 = vld [vmem:[%s0 + $0xc] sm:$0xf]
    %v253 = vld [vmem:[%s0 + $0x10] sm:$0xf]
    %v254 = vld [vmem:[%s0 + $0x14] sm:$0xf]
    %v255 = vld [vmem:[%s0 + $0x18] sm:$0xf]
    %v256 = vld [vmem:[%s0 + $0x1c] sm:$0xf]
    %v257 = vld [vmem:[#allocation2] sm:$0xf]
    %v258 = vld [vmem:[#allocation2 + $0x4] sm:$0xf]
    %v259 = vld [vmem:[%s2] sm:$0xff]
    %v260 = vld [vmem:[%s2 + $0x8] sm:$0xff]
    %v261 = vld [vmem:[%s2 + $0x10] sm:$0xff]
    %v262 = vld [vmem:[%s2 + $0x18] sm:$0xff]
    %v263 = vld [vmem:[#allocation5] sm:$0x1]
    %v264 = vld [vmem:[#allocation7] sm:$0x1]
    %v266 = vperm.slane %v263, 0
    %v276 = vunpack.c.l.b16 %v249
    %v277 = vunpack.c.l.b16 %v250
    %v278 = vunpack.c.l.b16 %v251
    %v279 = vunpack.c.l.b16 %v252
    %v280 = vunpack.c.l.b16 %v253
    %v281 = vunpack.c.l.b16 %v254
    %v282 = vunpack.c.l.b16 %v255
    %v283 = vunpack.c.l.b16 %v256
    %v284 = vpack.c.b16 %v277, %v276
    %v285 = vpack.c.b16 %v279, %v278
    %v286 = vpack.c.b16 %v281, %v280
    %v287 = vpack.c.b16 %v283, %v282
    %v290 = vunpack.c.l.b16 %v257
    %v291 = vunpack.c.l.b16 %v258
    %v292 = vpack.c.b16 %v291, %v290
    %vm294 = vcmask 130048
    %v296 = vsel %vm294, %v284, 0
    %v299 = vsel %vm294, %v285, 0
    %v302 = vsel %vm294, %v286, 0
    %v305 = vsel %vm294, %v287, 0
    %307 = vmatpush.bf16.msra.mxu0 0
    %308 = vmatpush.bf16.msra.mxu0 0
    %309 = vmatpush.bf16.msra.mxu0 0
    %310 = vmatpush.bf16.msra.mxu0 0
    %311 = vmatpush.bf16.msra.mxu0 0
    %312 = vmatpush.bf16.msra.mxu0 0
    %313 = vmatpush.bf16.msra.mxu0 0
    %314 = vmatpush.bf16.msra.mxu0 %v292
    %315 = vmatmul.bf16.gmra.mxu0 %v296
    %v316 = vpop.f32.mrf.mxu0
    %v317 = vadd.f32 %v266, %v316
    %v318 = vpop.f32.mrf.mxu0
    %v319 = vadd.f32 %v266, %v318
    %320 = vmatmul.bf16.gmra.mxu0 %v299
    %v321 = vpop.f32.mrf.mxu0
    %v322 = vadd.f32 %v266, %v321
    %v323 = vpop.f32.mrf.mxu0
    %v324 = vadd.f32 %v266, %v323
    %325 = vmatmul.bf16.gmra.mxu0 %v302
    %v326 = vpop.f32.mrf.mxu0
    %v327 = vadd.f32 %v266, %v326
    %v328 = vpop.f32.mrf.mxu0
    %v329 = vadd.f32 %v266, %v328
    %330 = vmatmul.bf16.gmra.mxu0 %v305
    %v331 = vpop.f32.mrf.mxu0
    %v332 = vadd.f32 %v266, %v331
    %v333 = vpop.f32.mrf.mxu0
    %v334 = vadd.f32 %v266, %v333
    %335 = vdwg.mxu0
    %v337 = vperm.slane %v264, 0
    %vm339 = vcmask 261120
    %v341 = vsel %vm339, 0.0, 0
    %343 = vmatpush.msra.mxu0 0.0
    %344 = vmatpush.msra.mxu0 0.0
    %345 = vmatpush.msra.mxu0 0.0
    %346 = vmatpush.msra.mxu0 0.0
    %347 = vmatpush.msra.mxu0 0.0
    %348 = vmatpush.msra.mxu0 0.0
    %349 = vmatpush.msra.mxu0 0.0
    %350 = vmatpush.msra.mxu0 0.0
    %351 = vmatpush.msra.mxu0 0.0
    %352 = vmatpush.msra.mxu0 0.0
    %353 = vmatpush.msra.mxu0 0.0
    %354 = vmatpush.msra.mxu0 0.0
    %355 = vmatpush.msra.mxu0 %v262
    %356 = vmatpush.msra.mxu0 %v261
    %357 = vmatpush.msra.mxu0 %v260
    %358 = vmatpush.msra.mxu0 %v259
    %359 = vmatmul.f32.gmra.mxu0 %v341
    %v360 = vpop.f32.mrf.mxu0
    %v361 = vadd.f32 %v337, %v360
    %362 = vdwg.mxu0
    %v363 = vadd.f32 %v317, %v361
    %v364 = vxor.u32 %v363, 2147483648
    %v365 = vmul.f32 %v364, 1.442695
    %v366 = vpow.pop %v365
    %v367 = vadd.f32 %v366, 1.0
    %v368 = vrcp.pop %v367
    %v369 = vmul.f32 %v367, %v368
    %v370 = vsub.f32 1.0, %v369
    %v371 = vmul.f32 %v368, %v370
    %v372 = vadd.f32 %v368, %v371
    %vm373 = vweird.f32 %v367
    %vm374 = vweird.f32 %v368
    %vm375 = vmor %vm373, %vm374
    %v376 = vsel %vm375, %v368, %v372
    %v377 = vand.u32 2147483647, %v367
    %vm378 = vcmp.eq.f32.partialorder %v377, 8.507059e+37
    %v379 = vand.u32 %v367, 2147483648
    %v380 = vor.u32 1.1754944e-38, %v379
    %v381 = vsel %vm378, %v380, %v376
    %v382 = vmul.f32 1.0, %v381
    %384 = vrot.lane.b32.xlu0 %v361, 64
    %v385 = vpop.permute.xlu0 %384
    %v387 = vmul.f32 %v382, %v385
    %389 = vrot.lane.b32.xlu0 %v387, 64
    %v390 = vpop.permute.xlu0 %389
    %v392 = vadd.f32 %v317, %v390
    %v393 = vtanh.pop %v392
    %v394 = vsub.f32 1.0, %v382
    %396 = vrot.lane.b32.xlu0 %v393, 96
    %v397 = vpop.permute.xlu0 %396
    %v399 = vmul.f32 %v394, %v397
    %v400 = vmul.f32 %v382, 0.0
    %v401 = vadd.f32 %v399, %v400
    %403 = vrot.lane.b32.xlu0 %v401, 96
    %v404 = vpop.permute.xlu0 %403
    %v405 = vsel %vm339, %v404, 0
    %407 = vmatpush.msra.mxu0 0.0
    %408 = vmatpush.msra.mxu0 0.0
    %409 = vmatpush.msra.mxu0 0.0
    %410 = vmatpush.msra.mxu0 0.0
    %411 = vmatpush.msra.mxu0 0.0
    %412 = vmatpush.msra.mxu0 0.0
    %413 = vmatpush.msra.mxu0 0.0
    %414 = vmatpush.msra.mxu0 0.0
    %415 = vmatpush.msra.mxu0 0.0
    %416 = vmatpush.msra.mxu0 0.0
    %417 = vmatpush.msra.mxu0 0.0
    %418 = vmatpush.msra.mxu0 0.0
    %419 = vmatpush.msra.mxu0 %v262
    %420 = vmatpush.msra.mxu0 %v261
    %421 = vmatpush.msra.mxu0 %v260
    %422 = vmatpush.msra.mxu0 %v259
    %423 = vmatmul.f32.gmra.mxu0 %v405
    %v424 = vpop.f32.mrf.mxu0
    %v425 = vadd.f32 %v337, %v424
    %426 = vdwg.mxu0
    %v427 = vadd.f32 %v319, %v425
    %v428 = vxor.u32 %v427, 2147483648
    %v429 = vmul.f32 %v428, 1.442695
    %v430 = vpow.pop %v429
    %v431 = vadd.f32 %v430, 1.0
    %v432 = vrcp.pop %v431
    %v433 = vmul.f32 %v431, %v432
    %v434 = vsub.f32 1.0, %v433
    %v435 = vmul.f32 %v432, %v434
    %v436 = vadd.f32 %v432, %v435
    %vm437 = vweird.f32 %v431
    %vm438 = vweird.f32 %v432
    %vm439 = vmor %vm437, %vm438
    %v440 = vsel %vm439, %v432, %v436
    %v441 = vand.u32 2147483647, %v431
    %vm442 = vcmp.eq.f32.partialorder %v441, 8.507059e+37
    %v443 = vand.u32 %v431, 2147483648
    %v444 = vor.u32 1.1754944e-38, %v443
    %v445 = vsel %vm442, %v444, %v440
    %v446 = vmul.f32 1.0, %v445
    %448 = vrot.lane.b32.xlu0 %v425, 64
    %v449 = vpop.permute.xlu0 %448
    %v451 = vmul.f32 %v446, %v449
    %453 = vrot.lane.b32.xlu0 %v451, 64
    %v454 = vpop.permute.xlu0 %453
    %v456 = vadd.f32 %v319, %v454
    %v457 = vtanh.pop %v456
    %v458 = vsub.f32 1.0, %v446
    %460 = vrot.lane.b32.xlu0 %v457, 96
    %v461 = vpop.permute.xlu0 %460
    %v463 = vmul.f32 %v458, %v461
    %v464 = vmul.f32 %v446, %v401
    %v465 = vadd.f32 %v463, %v464
    %467 = vrot.lane.b32.xlu0 %v465, 96
    %v468 = vpop.permute.xlu0 %467
    %v469 = vsel %vm339, %v468, 0
    %471 = vmatpush.msra.mxu0 0.0
    %472 = vmatpush.msra.mxu0 0.0
    %473 = vmatpush.msra.mxu0 0.0
    %474 = vmatpush.msra.mxu0 0.0
    %475 = vmatpush.msra.mxu0 0.0
    %476 = vmatpush.msra.mxu0 0.0
    %477 = vmatpush.msra.mxu0 0.0
    %478 = vmatpush.msra.mxu0 0.0
    %479 = vmatpush.msra.mxu0 0.0
    %480 = vmatpush.msra.mxu0 0.0
    %481 = vmatpush.msra.mxu0 0.0
    %482 = vmatpush.msra.mxu0 0.0
    %483 = vmatpush.msra.mxu0 %v262
    %484 = vmatpush.msra.mxu0 %v261
    %485 = vmatpush.msra.mxu0 %v260
    %486 = vmatpush.msra.mxu0 %v259
    %487 = vmatmul.f32.gmra.mxu0 %v469
    %v488 = vpop.f32.mrf.mxu0
    %v489 = vadd.f32 %v337, %v488
    %490 = vdwg.mxu0
    %v491 = vadd.f32 %v322, %v489
    %v492 = vxor.u32 %v491, 2147483648
    %v493 = vmul.f32 %v492, 1.442695
    %v494 = vpow.pop %v493
    %v495 = vadd.f32 %v494, 1.0
    %v496 = vrcp.pop %v495
    %v497 = vmul.f32 %v495, %v496
    %v498 = vsub.f32 1.0, %v497
    %v499 = vmul.f32 %v496, %v498
    %v500 = vadd.f32 %v496, %v499
    %vm501 = vweird.f32 %v495
    %vm502 = vweird.f32 %v496
    %vm503 = vmor %vm501, %vm502
    %v504 = vsel %vm503, %v496, %v500
    %v505 = vand.u32 2147483647, %v495
    %vm506 = vcmp.eq.f32.partialorder %v505, 8.507059e+37
    %v507 = vand.u32 %v495, 2147483648
    %v508 = vor.u32 1.1754944e-38, %v507
    %v509 = vsel %vm506, %v508, %v504
    %v510 = vmul.f32 1.0, %v509
    %512 = vrot.lane.b32.xlu0 %v489, 64
    %v513 = vpop.permute.xlu0 %512
    %v515 = vmul.f32 %v510, %v513
    %517 = vrot.lane.b32.xlu0 %v515, 64
    %v518 = vpop.permute.xlu0 %517
    %v520 = vadd.f32 %v322, %v518
    %v521 = vtanh.pop %v520
    %v522 = vsub.f32 1.0, %v510
    %524 = vrot.lane.b32.xlu0 %v521, 96
    %v525 = vpop.permute.xlu0 %524
    %v527 = vmul.f32 %v522, %v525
    %v528 = vmul.f32 %v510, %v465
    %v529 = vadd.f32 %v527, %v528
    %531 = vrot.lane.b32.xlu0 %v529, 96
    %v532 = vpop.permute.xlu0 %531
    %v533 = vsel %vm339, %v532, 0
    %535 = vmatpush.msra.mxu0 0.0
    %536 = vmatpush.msra.mxu0 0.0
    %537 = vmatpush.msra.mxu0 0.0
    %538 = vmatpush.msra.mxu0 0.0
    %539 = vmatpush.msra.mxu0 0.0
    %540 = vmatpush.msra.mxu0 0.0
    %541 = vmatpush.msra.mxu0 0.0
    %542 = vmatpush.msra.mxu0 0.0
    %543 = vmatpush.msra.mxu0 0.0
    %544 = vmatpush.msra.mxu0 0.0
    %545 = vmatpush.msra.mxu0 0.0
    %546 = vmatpush.msra.mxu0 0.0
    %547 = vmatpush.msra.mxu0 %v262
    %548 = vmatpush.msra.mxu0 %v261
    %549 = vmatpush.msra.mxu0 %v260
    %550 = vmatpush.msra.mxu0 %v259
    %551 = vmatmul.f32.gmra.mxu0 %v533
    %v552 = vpop.f32.mrf.mxu0
    %v553 = vadd.f32 %v337, %v552
    %554 = vdwg.mxu0
    %v555 = vadd.f32 %v324, %v553
    %v556 = vxor.u32 %v555, 2147483648
    %v557 = vmul.f32 %v556, 1.442695
    %v558 = vpow.pop %v557
    %v559 = vadd.f32 %v558, 1.0
    %v560 = vrcp.pop %v559
    %v561 = vmul.f32 %v559, %v560
    %v562 = vsub.f32 1.0, %v561
    %v563 = vmul.f32 %v560, %v562
    %v564 = vadd.f32 %v560, %v563
    %vm565 = vweird.f32 %v559
    %vm566 = vweird.f32 %v560
    %vm567 = vmor %vm565, %vm566
    %v568 = vsel %vm567, %v560, %v564
    %v569 = vand.u32 2147483647, %v559
    %vm570 = vcmp.eq.f32.partialorder %v569, 8.507059e+37
    %v571 = vand.u32 %v559, 2147483648
    %v572 = vor.u32 1.1754944e-38, %v571
    %v573 = vsel %vm570, %v572, %v568
    %v574 = vmul.f32 1.0, %v573
    %576 = vrot.lane.b32.xlu0 %v553, 64
    %v577 = vpop.permute.xlu0 %576
    %v579 = vmul.f32 %v574, %v577
    %581 = vrot.lane.b32.xlu0 %v579, 64
    %v582 = vpop.permute.xlu0 %581
    %v584 = vadd.f32 %v324, %v582
    %v585 = vtanh.pop %v584
    %v586 = vsub.f32 1.0, %v574
    %588 = vrot.lane.b32.xlu0 %v585, 96
    %v589 = vpop.permute.xlu0 %588
    %v591 = vmul.f32 %v586, %v589
    %v592 = vmul.f32 %v574, %v529
    %v593 = vadd.f32 %v591, %v592
    %595 = vrot.lane.b32.xlu0 %v593, 96
    %v596 = vpop.permute.xlu0 %595
    %v597 = vsel %vm339, %v596, 0
    %599 = vmatpush.msra.mxu0 0.0
    %600 = vmatpush.msra.mxu0 0.0
    %601 = vmatpush.msra.mxu0 0.0
    %602 = vmatpush.msra.mxu0 0.0
    %603 = vmatpush.msra.mxu0 0.0
    %604 = vmatpush.msra.mxu0 0.0
    %605 = vmatpush.msra.mxu0 0.0
    %606 = vmatpush.msra.mxu0 0.0
    %607 = vmatpush.msra.mxu0 0.0
    %608 = vmatpush.msra.mxu0 0.0
    %609 = vmatpush.msra.mxu0 0.0
    %610 = vmatpush.msra.mxu0 0.0
    %611 = vmatpush.msra.mxu0 %v262
    %612 = vmatpush.msra.mxu0 %v261
    %613 = vmatpush.msra.mxu0 %v260
    %614 = vmatpush.msra.mxu0 %v259
    %615 = vmatmul.f32.gmra.mxu0 %v597
    %v616 = vpop.f32.mrf.mxu0
    %v617 = vadd.f32 %v337, %v616
    %618 = vdwg.mxu0
    %v619 = vadd.f32 %v327, %v617
    %v620 = vxor.u32 %v619, 2147483648
    %v621 = vmul.f32 %v620, 1.442695
    %v622 = vpow.pop %v621
    %v623 = vadd.f32 %v622, 1.0
    %v624 = vrcp.pop %v623
    %v625 = vmul.f32 %v623, %v624
    %v626 = vsub.f32 1.0, %v625
    %v627 = vmul.f32 %v624, %v626
    %v628 = vadd.f32 %v624, %v627
    %vm629 = vweird.f32 %v623
    %vm630 = vweird.f32 %v624
    %vm631 = vmor %vm629, %vm630
    %v632 = vsel %vm631, %v624, %v628
    %v633 = vand.u32 2147483647, %v623
    %vm634 = vcmp.eq.f32.partialorder %v633, 8.507059e+37
    %v635 = vand.u32 %v623, 2147483648
    %v636 = vor.u32 1.1754944e-38, %v635
    %v637 = vsel %vm634, %v636, %v632
    %v638 = vmul.f32 1.0, %v637
    %640 = vrot.lane.b32.xlu0 %v617, 64
    %v641 = vpop.permute.xlu0 %640
    %v643 = vmul.f32 %v638, %v641
    %645 = vrot.lane.b32.xlu0 %v643, 64
    %v646 = vpop.permute.xlu0 %645
    %v648 = vadd.f32 %v327, %v646
    %v649 = vtanh.pop %v648
    %v650 = vsub.f32 1.0, %v638
    %652 = vrot.lane.b32.xlu0 %v649, 96
    %v653 = vpop.permute.xlu0 %652
    %v655 = vmul.f32 %v650, %v653
    %v656 = vmul.f32 %v638, %v593
    %v657 = vadd.f32 %v655, %v656
    %659 = vrot.lane.b32.xlu0 %v657, 96
    %v660 = vpop.permute.xlu0 %659
    %v661 = vsel %vm339, %v660, 0
    %663 = vmatpush.msra.mxu0 0.0
    %664 = vmatpush.msra.mxu0 0.0
    %665 = vmatpush.msra.mxu0 0.0
    %666 = vmatpush.msra.mxu0 0.0
    %667 = vmatpush.msra.mxu0 0.0
    %668 = vmatpush.msra.mxu0 0.0
    %669 = vmatpush.msra.mxu0 0.0
    %670 = vmatpush.msra.mxu0 0.0
    %671 = vmatpush.msra.mxu0 0.0
    %672 = vmatpush.msra.mxu0 0.0
    %673 = vmatpush.msra.mxu0 0.0
    %674 = vmatpush.msra.mxu0 0.0
    %675 = vmatpush.msra.mxu0 %v262
    %676 = vmatpush.msra.mxu0 %v261
    %677 = vmatpush.msra.mxu0 %v260
    %678 = vmatpush.msra.mxu0 %v259
    %679 = vmatmul.f32.gmra.mxu0 %v661
    %v680 = vpop.f32.mrf.mxu0
    %v681 = vadd.f32 %v337, %v680
    %682 = vdwg.mxu0
    %v683 = vadd.f32 %v329, %v681
    %v684 = vxor.u32 %v683, 2147483648
    %v685 = vmul.f32 %v684, 1.442695
    %v686 = vpow.pop %v685
    %v687 = vadd.f32 %v686, 1.0
    %v688 = vrcp.pop %v687
    %v689 = vmul.f32 %v687, %v688
    %v690 = vsub.f32 1.0, %v689
    %v691 = vmul.f32 %v688, %v690
    %v692 = vadd.f32 %v688, %v691
    %vm693 = vweird.f32 %v687
    %vm694 = vweird.f32 %v688
    %vm695 = vmor %vm693, %vm694
    %v696 = vsel %vm695, %v688, %v692
    %v697 = vand.u32 2147483647, %v687
    %vm698 = vcmp.eq.f32.partialorder %v697, 8.507059e+37
    %v699 = vand.u32 %v687, 2147483648
    %v700 = vor.u32 1.1754944e-38, %v699
    %v701 = vsel %vm698, %v700, %v696
    %v702 = vmul.f32 1.0, %v701
    %704 = vrot.lane.b32.xlu0 %v681, 64
    %v705 = vpop.permute.xlu0 %704
    %v707 = vmul.f32 %v702, %v705
    %709 = vrot.lane.b32.xlu0 %v707, 64
    %v710 = vpop.permute.xlu0 %709
    %v712 = vadd.f32 %v329, %v710
    %v713 = vtanh.pop %v712
    %v714 = vsub.f32 1.0, %v702
    %716 = vrot.lane.b32.xlu0 %v713, 96
    %v717 = vpop.permute.xlu0 %716
    %v719 = vmul.f32 %v714, %v717
    %v720 = vmul.f32 %v702, %v657
    %v721 = vadd.f32 %v719, %v720
    %723 = vrot.lane.b32.xlu0 %v721, 96
    %v724 = vpop.permute.xlu0 %723
    %v725 = vsel %vm339, %v724, 0
    %727 = vmatpush.msra.mxu0 0.0
    %728 = vmatpush.msra.mxu0 0.0
    %729 = vmatpush.msra.mxu0 0.0
    %730 = vmatpush.msra.mxu0 0.0
    %731 = vmatpush.msra.mxu0 0.0
    %732 = vmatpush.msra.mxu0 0.0
    %733 = vmatpush.msra.mxu0 0.0
    %734 = vmatpush.msra.mxu0 0.0
    %735 = vmatpush.msra.mxu0 0.0
    %736 = vmatpush.msra.mxu0 0.0
    %737 = vmatpush.msra.mxu0 0.0
    %738 = vmatpush.msra.mxu0 0.0
    %739 = vmatpush.msra.mxu0 %v262
    %740 = vmatpush.msra.mxu0 %v261
    %741 = vmatpush.msra.mxu0 %v260
    %742 = vmatpush.msra.mxu0 %v259
    %743 = vmatmul.f32.gmra.mxu0 %v725
    %v744 = vpop.f32.mrf.mxu0
    %v745 = vadd.f32 %v337, %v744
    %746 = vdwg.mxu0
    %v747 = vadd.f32 %v332, %v745
    %v748 = vxor.u32 %v747, 2147483648
    %v749 = vmul.f32 %v748, 1.442695
    %v750 = vpow.pop %v749
    %v751 = vadd.f32 %v750, 1.0
    %v752 = vrcp.pop %v751
    %v753 = vmul.f32 %v751, %v752
    %v754 = vsub.f32 1.0, %v753
    %v755 = vmul.f32 %v752, %v754
    %v756 = vadd.f32 %v752, %v755
    %vm757 = vweird.f32 %v751
    %vm758 = vweird.f32 %v752
    %vm759 = vmor %vm757, %vm758
    %v760 = vsel %vm759, %v752, %v756
    %v761 = vand.u32 2147483647, %v751
    %vm762 = vcmp.eq.f32.partialorder %v761, 8.507059e+37
    %v763 = vand.u32 %v751, 2147483648
    %v764 = vor.u32 1.1754944e-38, %v763
    %v765 = vsel %vm762, %v764, %v760
    %v766 = vmul.f32 1.0, %v765
    %768 = vrot.lane.b32.xlu0 %v745, 64
    %v769 = vpop.permute.xlu0 %768
    %v771 = vmul.f32 %v766, %v769
    %773 = vrot.lane.b32.xlu0 %v771, 64
    %v774 = vpop.permute.xlu0 %773
    %v776 = vadd.f32 %v332, %v774
    %v777 = vtanh.pop %v776
    %v778 = vsub.f32 1.0, %v766
    %780 = vrot.lane.b32.xlu0 %v777, 96
    %v781 = vpop.permute.xlu0 %780
    %v783 = vmul.f32 %v778, %v781
    %v784 = vmul.f32 %v766, %v721
    %v785 = vadd.f32 %v783, %v784
    %787 = vrot.lane.b32.xlu0 %v785, 96
    %v788 = vpop.permute.xlu0 %787
    %v789 = vsel %vm339, %v788, 0
    %791 = vmatpush.msra.mxu0 0.0
    %792 = vmatpush.msra.mxu0 0.0
    %793 = vmatpush.msra.mxu0 0.0
    %794 = vmatpush.msra.mxu0 0.0
    %795 = vmatpush.msra.mxu0 0.0
    %796 = vmatpush.msra.mxu0 0.0
    %797 = vmatpush.msra.mxu0 0.0
    %798 = vmatpush.msra.mxu0 0.0
    %799 = vmatpush.msra.mxu0 0.0
    %800 = vmatpush.msra.mxu0 0.0
    %801 = vmatpush.msra.mxu0 0.0
    %802 = vmatpush.msra.mxu0 0.0
    %803 = vmatpush.msra.mxu0 %v262
    %804 = vmatpush.msra.mxu0 %v261
    %805 = vmatpush.msra.mxu0 %v260
    %806 = vmatpush.msra.mxu0 %v259
    %807 = vmatmul.f32.gmra.mxu0 %v789
    %v808 = vpop.f32.mrf.mxu0
    %v809 = vadd.f32 %v337, %v808
    %810 = vdwg.mxu0
    %v811 = vadd.f32 %v334, %v809
    %v812 = vxor.u32 %v811, 2147483648
    %v813 = vmul.f32 %v812, 1.442695
    %v814 = vpow.pop %v813
    %v815 = vadd.f32 %v814, 1.0
    %v816 = vrcp.pop %v815
    %v817 = vmul.f32 %v815, %v816
    %v818 = vsub.f32 1.0, %v817
    %v819 = vmul.f32 %v816, %v818
    %v820 = vadd.f32 %v816, %v819
    %vm821 = vweird.f32 %v815
    %vm822 = vweird.f32 %v816
    %vm823 = vmor %vm821, %vm822
    %v824 = vsel %vm823, %v816, %v820
    %v825 = vand.u32 2147483647, %v815
    %vm826 = vcmp.eq.f32.partialorder %v825, 8.507059e+37
    %v827 = vand.u32 %v815, 2147483648
    %v828 = vor.u32 1.1754944e-38, %v827
    %v829 = vsel %vm826, %v828, %v824
    %v830 = vmul.f32 1.0, %v829
    %832 = vrot.lane.b32.xlu0 %v809, 64
    %v833 = vpop.permute.xlu0 %832
    %v835 = vmul.f32 %v830, %v833
    %837 = vrot.lane.b32.xlu0 %v835, 64
    %v838 = vpop.permute.xlu0 %837
    %v840 = vadd.f32 %v334, %v838
    %v841 = vtanh.pop %v840
    %v842 = vsub.f32 1.0, %v830
    %844 = vrot.lane.b32.xlu0 %v841, 96
    %v845 = vpop.permute.xlu0 %844
    %v847 = vmul.f32 %v842, %v845
    %v848 = vmul.f32 %v830, %v785
    %v849 = vadd.f32 %v847, %v848
    %v850 = vpack.c.bf16 %v465, %v401
    %v851 = vpack.c.bf16 %v593, %v529
    %v852 = vpack.c.bf16 %v721, %v657
    %v853 = vpack.c.bf16 %v849, %v785
    %v854 = vld [vmem:[#allocation8] sm:$0xf]
    %v855 = vld [vmem:[#allocation8 + $0x4] sm:$0xf]
    %v856 = vld [vmem:[#allocation8 + $0x8] sm:$0xf]
    %v857 = vld [vmem:[#allocation8 + $0xc] sm:$0xf]
    %v858 = vld [vmem:[#allocation10] sm:$0xff]
    %v859 = vld [vmem:[#allocation10 + $0x8] sm:$0xff]
    %v860 = vld [vmem:[#allocation10 + $0x10] sm:$0xff]
    %v861 = vld [vmem:[#allocation10 + $0x18] sm:$0xff]
    %v862 = vld [vmem:[#allocation11] sm:$0x1]
    %v863 = vld [vmem:[#allocation13] sm:$0x1]
    %v865 = vperm.slane %v862, 0
    %871 = vrot.lane.b32.xlu0 %v850, 96
    %v872 = vpop.permute.xlu0 %871
    %873 = vrot.lane.b32.xlu0 %v851, 96
    %v874 = vpop.permute.xlu0 %873
    %875 = vrot.lane.b32.xlu0 %v852, 96
    %v876 = vpop.permute.xlu0 %875
    %877 = vrot.lane.b32.xlu0 %v853, 96
    %v878 = vpop.permute.xlu0 %877
    %v883 = vunpack.c.l.b16 %v854
    %v884 = vunpack.c.l.b16 %v855
    %v885 = vunpack.c.l.b16 %v856
    %v886 = vunpack.c.l.b16 %v857
    %v887 = vpack.c.b16 %v884, %v883
    %v888 = vpack.c.b16 %v886, %v885
    %v892 = vsel %vm339, %v872, 0
    %v895 = vsel %vm339, %v874, 0
    %v898 = vsel %vm339, %v876, 0
    %v901 = vsel %vm339, %v878, 0
    %903 = vmatpush.bf16.msra.mxu0 0
    %904 = vmatpush.bf16.msra.mxu0 0
    %905 = vmatpush.bf16.msra.mxu0 0
    %906 = vmatpush.bf16.msra.mxu0 0
    %907 = vmatpush.bf16.msra.mxu0 0
    %908 = vmatpush.bf16.msra.mxu0 0
    %909 = vmatpush.bf16.msra.mxu0 %v888
    %910 = vmatpush.bf16.msra.mxu0 %v887
    %911 = vmatmul.bf16.gmra.mxu0 %v892
    %v912 = vpop.f32.mrf.mxu0
    %v913 = vadd.f32 %v865, %v912
    %v914 = vpop.f32.mrf.mxu0
    %v915 = vadd.f32 %v865, %v914
    %916 = vmatmul.bf16.gmra.mxu0 %v895
    %v917 = vpop.f32.mrf.mxu0
    %v918 = vadd.f32 %v865, %v917
    %v919 = vpop.f32.mrf.mxu0
    %v920 = vadd.f32 %v865, %v919
    %921 = vmatmul.bf16.gmra.mxu0 %v898
    %v922 = vpop.f32.mrf.mxu0
    %v923 = vadd.f32 %v865, %v922
    %v924 = vpop.f32.mrf.mxu0
    %v925 = vadd.f32 %v865, %v924
    %926 = vmatmul.bf16.gmra.mxu0 %v901
    %v927 = vpop.f32.mrf.mxu0
    %v928 = vadd.f32 %v865, %v927
    %v929 = vpop.f32.mrf.mxu0
    %v930 = vadd.f32 %v865, %v929
    %931 = vdwg.mxu0
    %v933 = vperm.slane %v863, 0
    %935 = vmatpush.msra.mxu0 0.0
    %936 = vmatpush.msra.mxu0 0.0
    %937 = vmatpush.msra.mxu0 0.0
    %938 = vmatpush.msra.mxu0 0.0
    %939 = vmatpush.msra.mxu0 0.0
    %940 = vmatpush.msra.mxu0 0.0
    %941 = vmatpush.msra.mxu0 0.0
    %942 = vmatpush.msra.mxu0 0.0
    %943 = vmatpush.msra.mxu0 0.0
    %944 = vmatpush.msra.mxu0 0.0
    %945 = vmatpush.msra.mxu0 0.0
    %946 = vmatpush.msra.mxu0 0.0
    %947 = vmatpush.msra.mxu0 %v861
    %948 = vmatpush.msra.mxu0 %v860
    %949 = vmatpush.msra.mxu0 %v859
    %950 = vmatpush.msra.mxu0 %v858
    %951 = vmatmul.f32.gmra.mxu0 %v341
    %v952 = vpop.f32.mrf.mxu0
    %v953 = vadd.f32 %v933, %v952
    %954 = vdwg.mxu0
    %v955 = vadd.f32 %v913, %v953
    %v956 = vxor.u32 %v955, 2147483648
    %v957 = vmul.f32 %v956, 1.442695
    %v958 = vpow.pop %v957
    %v959 = vadd.f32 %v958, 1.0
    %v960 = vrcp.pop %v959
    %v961 = vmul.f32 %v959, %v960
    %v962 = vsub.f32 1.0, %v961
    %v963 = vmul.f32 %v960, %v962
    %v964 = vadd.f32 %v960, %v963
    %vm965 = vweird.f32 %v959
    %vm966 = vweird.f32 %v960
    %vm967 = vmor %vm965, %vm966
    %v968 = vsel %vm967, %v960, %v964
    %v969 = vand.u32 2147483647, %v959
    %vm970 = vcmp.eq.f32.partialorder %v969, 8.507059e+37
    %v971 = vand.u32 %v959, 2147483648
    %v972 = vor.u32 1.1754944e-38, %v971
    %v973 = vsel %vm970, %v972, %v968
    %v974 = vmul.f32 1.0, %v973
    %976 = vrot.lane.b32.xlu0 %v953, 64
    %v977 = vpop.permute.xlu0 %976
    %v979 = vmul.f32 %v974, %v977
    %981 = vrot.lane.b32.xlu0 %v979, 64
    %v982 = vpop.permute.xlu0 %981
    %v984 = vadd.f32 %v913, %v982
    %v985 = vtanh.pop %v984
    %v986 = vsub.f32 1.0, %v974
    %988 = vrot.lane.b32.xlu0 %v985, 96
    %v989 = vpop.permute.xlu0 %988
    %v991 = vmul.f32 %v986, %v989
    %v992 = vmul.f32 %v974, 0.0
    %v993 = vadd.f32 %v991, %v992
    %995 = vrot.lane.b32.xlu0 %v993, 96
    %v996 = vpop.permute.xlu0 %995
    %v997 = vsel %vm339, %v996, 0
    %999 = vmatpush.msra.mxu0 0.0
    %1000 = vmatpush.msra.mxu0 0.0
    %1001 = vmatpush.msra.mxu0 0.0
    %1002 = vmatpush.msra.mxu0 0.0
    %1003 = vmatpush.msra.mxu0 0.0
    %1004 = vmatpush.msra.mxu0 0.0
    %1005 = vmatpush.msra.mxu0 0.0
    %1006 = vmatpush.msra.mxu0 0.0
    %1007 = vmatpush.msra.mxu0 0.0
    %1008 = vmatpush.msra.mxu0 0.0
    %1009 = vmatpush.msra.mxu0 0.0
    %1010 = vmatpush.msra.mxu0 0.0
    %1011 = vmatpush.msra.mxu0 %v861
    %1012 = vmatpush.msra.mxu0 %v860
    %1013 = vmatpush.msra.mxu0 %v859
    %1014 = vmatpush.msra.mxu0 %v858
    %1015 = vmatmul.f32.gmra.mxu0 %v997
    %v1016 = vpop.f32.mrf.mxu0
    %v1017 = vadd.f32 %v933, %v1016
    %1018 = vdwg.mxu0
    %v1019 = vadd.f32 %v915, %v1017
    %v1020 = vxor.u32 %v1019, 2147483648
    %v1021 = vmul.f32 %v1020, 1.442695
    %v1022 = vpow.pop %v1021
    %v1023 = vadd.f32 %v1022, 1.0
    %v1024 = vrcp.pop %v1023
    %v1025 = vmul.f32 %v1023, %v1024
    %v1026 = vsub.f32 1.0, %v1025
    %v1027 = vmul.f32 %v1024, %v1026
    %v1028 = vadd.f32 %v1024, %v1027
    %vm1029 = vweird.f32 %v1023
    %vm1030 = vweird.f32 %v1024
    %vm1031 = vmor %vm1029, %vm1030
    %v1032 = vsel %vm1031, %v1024, %v1028
    %v1033 = vand.u32 2147483647, %v1023
    %vm1034 = vcmp.eq.f32.partialorder %v1033, 8.507059e+37
    %v1035 = vand.u32 %v1023, 2147483648
    %v1036 = vor.u32 1.1754944e-38, %v1035
    %v1037 = vsel %vm1034, %v1036, %v1032
    %v1038 = vmul.f32 1.0, %v1037
    %1040 = vrot.lane.b32.xlu0 %v1017, 64
    %v1041 = vpop.permute.xlu0 %1040
    %v1043 = vmul.f32 %v1038, %v1041
    %1045 = vrot.lane.b32.xlu0 %v1043, 64
    %v1046 = vpop.permute.xlu0 %1045
    %v1048 = vadd.f32 %v915, %v1046
    %v1049 = vtanh.pop %v1048
    %v1050 = vsub.f32 1.0, %v1038
    %1052 = vrot.lane.b32.xlu0 %v1049, 96
    %v1053 = vpop.permute.xlu0 %1052
    %v1055 = vmul.f32 %v1050, %v1053
    %v1056 = vmul.f32 %v1038, %v993
    %v1057 = vadd.f32 %v1055, %v1056
    %1059 = vrot.lane.b32.xlu0 %v1057, 96
    %v1060 = vpop.permute.xlu0 %1059
    %v1061 = vsel %vm339, %v1060, 0
    %1063 = vmatpush.msra.mxu0 0.0
    %1064 = vmatpush.msra.mxu0 0.0
    %1065 = vmatpush.msra.mxu0 0.0
    %1066 = vmatpush.msra.mxu0 0.0
    %1067 = vmatpush.msra.mxu0 0.0
    %1068 = vmatpush.msra.mxu0 0.0
    %1069 = vmatpush.msra.mxu0 0.0
    %1070 = vmatpush.msra.mxu0 0.0
    %1071 = vmatpush.msra.mxu0 0.0
    %1072 = vmatpush.msra.mxu0 0.0
    %1073 = vmatpush.msra.mxu0 0.0
    %1074 = vmatpush.msra.mxu0 0.0
    %1075 = vmatpush.msra.mxu0 %v861
    %1076 = vmatpush.msra.mxu0 %v860
    %1077 = vmatpush.msra.mxu0 %v859
    %1078 = vmatpush.msra.mxu0 %v858
    %1079 = vmatmul.f32.gmra.mxu0 %v1061
    %v1080 = vpop.f32.mrf.mxu0
    %v1081 = vadd.f32 %v933, %v1080
    %1082 = vdwg.mxu0
    %v1083 = vadd.f32 %v918, %v1081
    %v1084 = vxor.u32 %v1083, 2147483648
    %v1085 = vmul.f32 %v1084, 1.442695
    %v1086 = vpow.pop %v1085
    %v1087 = vadd.f32 %v1086, 1.0
    %v1088 = vrcp.pop %v1087
    %v1089 = vmul.f32 %v1087, %v1088
    %v1090 = vsub.f32 1.0, %v1089
    %v1091 = vmul.f32 %v1088, %v1090
    %v1092 = vadd.f32 %v1088, %v1091
    %vm1093 = vweird.f32 %v1087
    %vm1094 = vweird.f32 %v1088
    %vm1095 = vmor %vm1093, %vm1094
    %v1096 = vsel %vm1095, %v1088, %v1092
    %v1097 = vand.u32 2147483647, %v1087
    %vm1098 = vcmp.eq.f32.partialorder %v1097, 8.507059e+37
    %v1099 = vand.u32 %v1087, 2147483648
    %v1100 = vor.u32 1.1754944e-38, %v1099
    %v1101 = vsel %vm1098, %v1100, %v1096
    %v1102 = vmul.f32 1.0, %v1101
    %1104 = vrot.lane.b32.xlu0 %v1081, 64
    %v1105 = vpop.permute.xlu0 %1104
    %v1107 = vmul.f32 %v1102, %v1105
    %1109 = vrot.lane.b32.xlu0 %v1107, 64
    %v1110 = vpop.permute.xlu0 %1109
    %v1112 = vadd.f32 %v918, %v1110
    %v1113 = vtanh.pop %v1112
    %v1114 = vsub.f32 1.0, %v1102
    %1116 = vrot.lane.b32.xlu0 %v1113, 96
    %v1117 = vpop.permute.xlu0 %1116
    %v1119 = vmul.f32 %v1114, %v1117
    %v1120 = vmul.f32 %v1102, %v1057
    %v1121 = vadd.f32 %v1119, %v1120
    %1123 = vrot.lane.b32.xlu0 %v1121, 96
    %v1124 = vpop.permute.xlu0 %1123
    %v1125 = vsel %vm339, %v1124, 0
    %1127 = vmatpush.msra.mxu0 0.0
    %1128 = vmatpush.msra.mxu0 0.0
    %1129 = vmatpush.msra.mxu0 0.0
    %1130 = vmatpush.msra.mxu0 0.0
    %1131 = vmatpush.msra.mxu0 0.0
    %1132 = vmatpush.msra.mxu0 0.0
    %1133 = vmatpush.msra.mxu0 0.0
    %1134 = vmatpush.msra.mxu0 0.0
    %1135 = vmatpush.msra.mxu0 0.0
    %1136 = vmatpush.msra.mxu0 0.0
    %1137 = vmatpush.msra.mxu0 0.0
    %1138 = vmatpush.msra.mxu0 0.0
    %1139 = vmatpush.msra.mxu0 %v861
    %1140 = vmatpush.msra.mxu0 %v860
    %1141 = vmatpush.msra.mxu0 %v859
    %1142 = vmatpush.msra.mxu0 %v858
    %1143 = vmatmul.f32.gmra.mxu0 %v1125
    %v1144 = vpop.f32.mrf.mxu0
    %v1145 = vadd.f32 %v933, %v1144
    %1146 = vdwg.mxu0
    %v1147 = vadd.f32 %v920, %v1145
    %v1148 = vxor.u32 %v1147, 2147483648
    %v1149 = vmul.f32 %v1148, 1.442695
    %v1150 = vpow.pop %v1149
    %v1151 = vadd.f32 %v1150, 1.0
    %v1152 = vrcp.pop %v1151
    %v1153 = vmul.f32 %v1151, %v1152
    %v1154 = vsub.f32 1.0, %v1153
    %v1155 = vmul.f32 %v1152, %v1154
    %v1156 = vadd.f32 %v1152, %v1155
    %vm1157 = vweird.f32 %v1151
    %vm1158 = vweird.f32 %v1152
    %vm1159 = vmor %vm1157, %vm1158
    %v1160 = vsel %vm1159, %v1152, %v1156
    %v1161 = vand.u32 2147483647, %v1151
    %vm1162 = vcmp.eq.f32.partialorder %v1161, 8.507059e+37
    %v1163 = vand.u32 %v1151, 2147483648
    %v1164 = vor.u32 1.1754944e-38, %v1163
    %v1165 = vsel %vm1162, %v1164, %v1160
    %v1166 = vmul.f32 1.0, %v1165
    %1168 = vrot.lane.b32.xlu0 %v1145, 64
    %v1169 = vpop.permute.xlu0 %1168
    %v1171 = vmul.f32 %v1166, %v1169
    %1173 = vrot.lane.b32.xlu0 %v1171, 64
    %v1174 = vpop.permute.xlu0 %1173
    %v1176 = vadd.f32 %v920, %v1174
    %v1177 = vtanh.pop %v1176
    %v1178 = vsub.f32 1.0, %v1166
    %1180 = vrot.lane.b32.xlu0 %v1177, 96
    %v1181 = vpop.permute.xlu0 %1180
    %v1183 = vmul.f32 %v1178, %v1181
    %v1184 = vmul.f32 %v1166, %v1121
    %v1185 = vadd.f32 %v1183, %v1184
    %1187 = vrot.lane.b32.xlu0 %v1185, 96
    %v1188 = vpop.permute.xlu0 %1187
    %v1189 = vsel %vm339, %v1188, 0
    %1191 = vmatpush.msra.mxu0 0.0
    %1192 = vmatpush.msra.mxu0 0.0
    %1193 = vmatpush.msra.mxu0 0.0
    %1194 = vmatpush.msra.mxu0 0.0
    %1195 = vmatpush.msra.mxu0 0.0
    %1196 = vmatpush.msra.mxu0 0.0
    %1197 = vmatpush.msra.mxu0 0.0
    %1198 = vmatpush.msra.mxu0 0.0
    %1199 = vmatpush.msra.mxu0 0.0
    %1200 = vmatpush.msra.mxu0 0.0
    %1201 = vmatpush.msra.mxu0 0.0
    %1202 = vmatpush.msra.mxu0 0.0
    %1203 = vmatpush.msra.mxu0 %v861
    %1204 = vmatpush.msra.mxu0 %v860
    %1205 = vmatpush.msra.mxu0 %v859
    %1206 = vmatpush.msra.mxu0 %v858
    %1207 = vmatmul.f32.gmra.mxu0 %v1189
    %v1208 = vpop.f32.mrf.mxu0
    %v1209 = vadd.f32 %v933, %v1208
    %1210 = vdwg.mxu0
    %v1211 = vadd.f32 %v923, %v1209
    %v1212 = vxor.u32 %v1211, 2147483648
    %v1213 = vmul.f32 %v1212, 1.442695
    %v1214 = vpow.pop %v1213
    %v1215 = vadd.f32 %v1214, 1.0
    %v1216 = vrcp.pop %v1215
    %v1217 = vmul.f32 %v1215, %v1216
    %v1218 = vsub.f32 1.0, %v1217
    %v1219 = vmul.f32 %v1216, %v1218
    %v1220 = vadd.f32 %v1216, %v1219
    %vm1221 = vweird.f32 %v1215
    %vm1222 = vweird.f32 %v1216
    %vm1223 = vmor %vm1221, %vm1222
    %v1224 = vsel %vm1223, %v1216, %v1220
    %v1225 = vand.u32 2147483647, %v1215
    %vm1226 = vcmp.eq.f32.partialorder %v1225, 8.507059e+37
    %v1227 = vand.u32 %v1215, 2147483648
    %v1228 = vor.u32 1.1754944e-38, %v1227
    %v1229 = vsel %vm1226, %v1228, %v1224
    %v1230 = vmul.f32 1.0, %v1229
    %1232 = vrot.lane.b32.xlu0 %v1209, 64
    %v1233 = vpop.permute.xlu0 %1232
    %v1235 = vmul.f32 %v1230, %v1233
    %1237 = vrot.lane.b32.xlu0 %v1235, 64
    %v1238 = vpop.permute.xlu0 %1237
    %v1240 = vadd.f32 %v923, %v1238
    %v1241 = vtanh.pop %v1240
    %v1242 = vsub.f32 1.0, %v1230
    %1244 = vrot.lane.b32.xlu0 %v1241, 96
    %v1245 = vpop.permute.xlu0 %1244
    %v1247 = vmul.f32 %v1242, %v1245
    %v1248 = vmul.f32 %v1230, %v1185
    %v1249 = vadd.f32 %v1247, %v1248
    %1251 = vrot.lane.b32.xlu0 %v1249, 96
    %v1252 = vpop.permute.xlu0 %1251
    %v1253 = vsel %vm339, %v1252, 0
    %1255 = vmatpush.msra.mxu0 0.0
    %1256 = vmatpush.msra.mxu0 0.0
    %1257 = vmatpush.msra.mxu0 0.0
    %1258 = vmatpush.msra.mxu0 0.0
    %1259 = vmatpush.msra.mxu0 0.0
    %1260 = vmatpush.msra.mxu0 0.0
    %1261 = vmatpush.msra.mxu0 0.0
    %1262 = vmatpush.msra.mxu0 0.0
    %1263 = vmatpush.msra.mxu0 0.0
    %1264 = vmatpush.msra.mxu0 0.0
    %1265 = vmatpush.msra.mxu0 0.0
    %1266 = vmatpush.msra.mxu0 0.0
    %1267 = vmatpush.msra.mxu0 %v861
    %1268 = vmatpush.msra.mxu0 %v860
    %1269 = vmatpush.msra.mxu0 %v859
    %1270 = vmatpush.msra.mxu0 %v858
    %1271 = vmatmul.f32.gmra.mxu0 %v1253
    %v1272 = vpop.f32.mrf.mxu0
    %v1273 = vadd.f32 %v933, %v1272
    %1274 = vdwg.mxu0
    %v1275 = vadd.f32 %v925, %v1273
    %v1276 = vxor.u32 %v1275, 2147483648
    %v1277 = vmul.f32 %v1276, 1.442695
    %v1278 = vpow.pop %v1277
    %v1279 = vadd.f32 %v1278, 1.0
    %v1280 = vrcp.pop %v1279
    %v1281 = vmul.f32 %v1279, %v1280
    %v1282 = vsub.f32 1.0, %v1281
    %v1283 = vmul.f32 %v1280, %v1282
    %v1284 = vadd.f32 %v1280, %v1283
    %vm1285 = vweird.f32 %v1279
    %vm1286 = vweird.f32 %v1280
    %vm1287 = vmor %vm1285, %vm1286
    %v1288 = vsel %vm1287, %v1280, %v1284
    %v1289 = vand.u32 2147483647, %v1279
    %vm1290 = vcmp.eq.f32.partialorder %v1289, 8.507059e+37
    %v1291 = vand.u32 %v1279, 2147483648
    %v1292 = vor.u32 1.1754944e-38, %v1291
    %v1293 = vsel %vm1290, %v1292, %v1288
    %v1294 = vmul.f32 1.0, %v1293
    %1296 = vrot.lane.b32.xlu0 %v1273, 64
    %v1297 = vpop.permute.xlu0 %1296
    %v1299 = vmul.f32 %v1294, %v1297
    %1301 = vrot.lane.b32.xlu0 %v1299, 64
    %v1302 = vpop.permute.xlu0 %1301
    %v1304 = vadd.f32 %v925, %v1302
    %v1305 = vtanh.pop %v1304
    %v1306 = vsub.f32 1.0, %v1294
    %1308 = vrot.lane.b32.xlu0 %v1305, 96
    %v1309 = vpop.permute.xlu0 %1308
    %v1311 = vmul.f32 %v1306, %v1309
    %v1312 = vmul.f32 %v1294, %v1249
    %v1313 = vadd.f32 %v1311, %v1312
    %1315 = vrot.lane.b32.xlu0 %v1313, 96
    %v1316 = vpop.permute.xlu0 %1315
    %v1317 = vsel %vm339, %v1316, 0
    %1319 = vmatpush.msra.mxu0 0.0
    %1320 = vmatpush.msra.mxu0 0.0
    %1321 = vmatpush.msra.mxu0 0.0
    %1322 = vmatpush.msra.mxu0 0.0
    %1323 = vmatpush.msra.mxu0 0.0
    %1324 = vmatpush.msra.mxu0 0.0
    %1325 = vmatpush.msra.mxu0 0.0
    %1326 = vmatpush.msra.mxu0 0.0
    %1327 = vmatpush.msra.mxu0 0.0
    %1328 = vmatpush.msra.mxu0 0.0
    %1329 = vmatpush.msra.mxu0 0.0
    %1330 = vmatpush.msra.mxu0 0.0
    %1331 = vmatpush.msra.mxu0 %v861
    %1332 = vmatpush.msra.mxu0 %v860
    %1333 = vmatpush.msra.mxu0 %v859
    %1334 = vmatpush.msra.mxu0 %v858
    %1335 = vmatmul.f32.gmra.mxu0 %v1317
    %v1336 = vpop.f32.mrf.mxu0
    %v1337 = vadd.f32 %v933, %v1336
    %1338 = vdwg.mxu0
    %v1339 = vadd.f32 %v928, %v1337
    %v1340 = vxor.u32 %v1339, 2147483648
    %v1341 = vmul.f32 %v1340, 1.442695
    %v1342 = vpow.pop %v1341
    %v1343 = vadd.f32 %v1342, 1.0
    %v1344 = vrcp.pop %v1343
    %v1345 = vmul.f32 %v1343, %v1344
    %v1346 = vsub.f32 1.0, %v1345
    %v1347 = vmul.f32 %v1344, %v1346
    %v1348 = vadd.f32 %v1344, %v1347
    %vm1349 = vweird.f32 %v1343
    %vm1350 = vweird.f32 %v1344
    %vm1351 = vmor %vm1349, %vm1350
    %v1352 = vsel %vm1351, %v1344, %v1348
    %v1353 = vand.u32 2147483647, %v1343
    %vm1354 = vcmp.eq.f32.partialorder %v1353, 8.507059e+37
    %v1355 = vand.u32 %v1343, 2147483648
    %v1356 = vor.u32 1.1754944e-38, %v1355
    %v1357 = vsel %vm1354, %v1356, %v1352
    %v1358 = vmul.f32 1.0, %v1357
    %1360 = vrot.lane.b32.xlu0 %v1337, 64
    %v1361 = vpop.permute.xlu0 %1360
    %v1363 = vmul.f32 %v1358, %v1361
    %1365 = vrot.lane.b32.xlu0 %v1363, 64
    %v1366 = vpop.permute.xlu0 %1365
    %v1368 = vadd.f32 %v928, %v1366
    %v1369 = vtanh.pop %v1368
    %v1370 = vsub.f32 1.0, %v1358
    %1372 = vrot.lane.b32.xlu0 %v1369, 96
    %v1373 = vpop.permute.xlu0 %1372
    %v1375 = vmul.f32 %v1370, %v1373
    %v1376 = vmul.f32 %v1358, %v1313
    %v1377 = vadd.f32 %v1375, %v1376
    %1379 = vrot.lane.b32.xlu0 %v1377, 96
    %v1380 = vpop.permute.xlu0 %1379
    %v1381 = vsel %vm339, %v1380, 0
    %1383 = vmatpush.msra.mxu0 0.0
    %1384 = vmatpush.msra.mxu0 0.0
    %1385 = vmatpush.msra.mxu0 0.0
    %1386 = vmatpush.msra.mxu0 0.0
    %1387 = vmatpush.msra.mxu0 0.0
    %1388 = vmatpush.msra.mxu0 0.0
    %1389 = vmatpush.msra.mxu0 0.0
    %1390 = vmatpush.msra.mxu0 0.0
    %1391 = vmatpush.msra.mxu0 0.0
    %1392 = vmatpush.msra.mxu0 0.0
    %1393 = vmatpush.msra.mxu0 0.0
    %1394 = vmatpush.msra.mxu0 0.0
    %1395 = vmatpush.msra.mxu0 %v861
    %1396 = vmatpush.msra.mxu0 %v860
    %1397 = vmatpush.msra.mxu0 %v859
    %1398 = vmatpush.msra.mxu0 %v858
    %1399 = vmatmul.f32.gmra.mxu0 %v1381
    %v1400 = vpop.f32.mrf.mxu0
    %v1401 = vadd.f32 %v933, %v1400
    %1402 = vdwg.mxu0
    %v1403 = vadd.f32 %v930, %v1401
    %v1404 = vxor.u32 %v1403, 2147483648
    %v1405 = vmul.f32 %v1404, 1.442695
    %v1406 = vpow.pop %v1405
    %v1407 = vadd.f32 %v1406, 1.0
    %v1408 = vrcp.pop %v1407
    %v1409 = vmul.f32 %v1407, %v1408
    %v1410 = vsub.f32 1.0, %v1409
    %v1411 = vmul.f32 %v1408, %v1410
    %v1412 = vadd.f32 %v1408, %v1411
    %vm1413 = vweird.f32 %v1407
    %vm1414 = vweird.f32 %v1408
    %vm1415 = vmor %vm1413, %vm1414
    %v1416 = vsel %vm1415, %v1408, %v1412
    %v1417 = vand.u32 2147483647, %v1407
    %vm1418 = vcmp.eq.f32.partialorder %v1417, 8.507059e+37
    %v1419 = vand.u32 %v1407, 2147483648
    %v1420 = vor.u32 1.1754944e-38, %v1419
    %v1421 = vsel %vm1418, %v1420, %v1416
    %v1422 = vmul.f32 1.0, %v1421
    %1424 = vrot.lane.b32.xlu0 %v1401, 64
    %v1425 = vpop.permute.xlu0 %1424
    %v1427 = vmul.f32 %v1422, %v1425
    %1429 = vrot.lane.b32.xlu0 %v1427, 64
    %v1430 = vpop.permute.xlu0 %1429
    %v1432 = vadd.f32 %v930, %v1430
    %v1433 = vtanh.pop %v1432
    %v1434 = vsub.f32 1.0, %v1422
    %1436 = vrot.lane.b32.xlu0 %v1433, 96
    %v1437 = vpop.permute.xlu0 %1436
    %v1439 = vmul.f32 %v1434, %v1437
    %v1440 = vmul.f32 %v1422, %v1377
    %v1441 = vadd.f32 %v1439, %v1440
    %v1442 = vpack.c.bf16 %v1057, %v993
    %v1443 = vpack.c.bf16 %v1185, %v1121
    %v1444 = vpack.c.bf16 %v1313, %v1249
    %v1445 = vpack.c.bf16 %v1441, %v1377
    %v1446 = vld [vmem:[%s9] sm:$0xf]
    %v1447 = vld [vmem:[%s9 + $0x4] sm:$0xf]
    %v1448 = vld [vmem:[%s9 + $0x8] sm:$0xf]
    %v1449 = vld [vmem:[%s9 + $0xc] sm:$0xf]
    %v1450 = vld [vmem:[%s10] sm:$0x1]
    %v1452 = vperm.slane %v1450, 0
    %1458 = vrot.lane.b32.xlu0 %v1442, 96
    %v1459 = vpop.permute.xlu0 %1458
    %1460 = vrot.lane.b32.xlu0 %v1443, 96
    %v1461 = vpop.permute.xlu0 %1460
    %1462 = vrot.lane.b32.xlu0 %v1444, 96
    %v1463 = vpop.permute.xlu0 %1462
    %1464 = vrot.lane.b32.xlu0 %v1445, 96
    %v1465 = vpop.permute.xlu0 %1464
    %v1470 = vunpack.c.l.b16 %v1446
    %v1471 = vunpack.c.l.b16 %v1447
    %v1472 = vunpack.c.l.b16 %v1448
    %v1473 = vunpack.c.l.b16 %v1449
    %v1474 = vpack.c.b16 %v1471, %v1470
    %v1475 = vpack.c.b16 %v1473, %v1472
    %v1479 = vsel %vm339, %v1459, 0
    %v1482 = vsel %vm339, %v1461, 0
    %v1485 = vsel %vm339, %v1463, 0
    %v1488 = vsel %vm339, %v1465, 0
    %1490 = vmatpush.bf16.msra.mxu0 0
    %1491 = vmatpush.bf16.msra.mxu0 0
    %1492 = vmatpush.bf16.msra.mxu0 0
    %1493 = vmatpush.bf16.msra.mxu0 0
    %1494 = vmatpush.bf16.msra.mxu0 0
    %1495 = vmatpush.bf16.msra.mxu0 0
    %1496 = vmatpush.bf16.msra.mxu0 %v1475
    %1497 = vmatpush.bf16.msra.mxu0 %v1474
    %1498 = vmatmul.bf16.gmra.mxu0 %v1479
    %v1499 = vpop.f32.mrf.mxu0
    %v1500 = vadd.f32 %v1452, %v1499
    %v1501 = vpop.f32.mrf.mxu0
    %v1502 = vadd.f32 %v1452, %v1501
    %1503 = vmatmul.bf16.gmra.mxu0 %v1482
    %v1504 = vpop.f32.mrf.mxu0
    %v1505 = vadd.f32 %v1452, %v1504
    %v1506 = vpop.f32.mrf.mxu0
    %v1507 = vadd.f32 %v1452, %v1506
    %1508 = vmatmul.bf16.gmra.mxu0 %v1485
    %v1509 = vpop.f32.mrf.mxu0
    %v1510 = vadd.f32 %v1452, %v1509
    %v1511 = vpop.f32.mrf.mxu0
    %v1512 = vadd.f32 %v1452, %v1511
    %1513 = vmatmul.bf16.gmra.mxu0 %v1488
    %v1514 = vpop.f32.mrf.mxu0
    %v1515 = vadd.f32 %v1452, %v1514
    %v1516 = vpop.f32.mrf.mxu0
    %v1517 = vadd.f32 %v1452, %v1516
    %1518 = vdwg.mxu0
    %v1519 = vmax.f32 %v1500, 0.0
    %v1520 = vmax.f32 %v1502, 0.0
    %v1521 = vmax.f32 %v1505, 0.0
    %v1522 = vmax.f32 %v1507, 0.0
    %v1523 = vmax.f32 %v1510, 0.0
    %v1524 = vmax.f32 %v1512, 0.0
    %v1525 = vmax.f32 %v1515, 0.0
    %v1526 = vmax.f32 %v1517, 0.0
    %v1527 = vpack.c.bf16 %v1520, %v1519
    %v1528 = vpack.c.bf16 %v1522, %v1521
    %v1529 = vpack.c.bf16 %v1524, %v1523
    %v1530 = vpack.c.bf16 %v1526, %v1525
    %v1531 = vld [vmem:[#allocation14] sm:$0xf]
    %v1532 = vld [vmem:[#allocation14 + $0x4] sm:$0xf]
    %v1533 = vld [vmem:[#allocation14 + $0x8] sm:$0xf]
    %v1534 = vld [vmem:[#allocation14 + $0xc] sm:$0xf]
    %v1535 = vld [vmem:[#allocation14 + $0x10] sm:$0xf]
    %v1536 = vld [vmem:[#allocation14 + $0x14] sm:$0xf]
    %v1537 = vld [vmem:[#allocation14 + $0x18] sm:$0xf]
    %v1538 = vld [vmem:[#allocation14 + $0x1c] sm:$0xf]
    %v1539 = vld [vmem:[#allocation14 + $0x20] sm:$0xf]
    %v1540 = vld [vmem:[#allocation14 + $0x24] sm:$0xf]
    %v1541 = vld [vmem:[#allocation14 + $0x28] sm:$0xf]
    %v1542 = vld [vmem:[#allocation14 + $0x2c] sm:$0xf]
    %v1543 = vld [vmem:[#allocation14 + $0x30] sm:$0xf]
    %v1544 = vld [vmem:[#allocation14 + $0x34] sm:$0xf]
    %v1545 = vld [vmem:[#allocation14 + $0x38] sm:$0xf]
    %v1546 = vld [vmem:[#allocation14 + $0x3c] sm:$0xf]
    %v1547 = vld [vmem:[%s12] sm:$0x1]
    %v1549 = vperm.slane %v1547, 0
    %v1567 = vunpack.c.l.b16 %v1531
    %v1568 = vunpack.c.l.b16 %v1532
    %v1569 = vunpack.c.l.b16 %v1533
    %v1570 = vunpack.c.l.b16 %v1534
    %v1571 = vunpack.c.l.b16 %v1535
    %v1572 = vunpack.c.l.b16 %v1536
    %v1573 = vunpack.c.l.b16 %v1537
    %v1574 = vunpack.c.l.b16 %v1538
    %v1575 = vunpack.c.l.b16 %v1539
    %v1576 = vunpack.c.l.b16 %v1540
    %v1577 = vunpack.c.l.b16 %v1541
    %v1578 = vunpack.c.l.b16 %v1542
    %v1579 = vunpack.c.l.b16 %v1543
    %v1580 = vunpack.c.l.b16 %v1544
    %v1581 = vunpack.c.l.b16 %v1545
    %v1582 = vunpack.c.l.b16 %v1546
    %v1583 = vpack.c.b16 %v1568, %v1567
    %v1584 = vpack.c.b16 %v1570, %v1569
    %v1585 = vpack.c.b16 %v1572, %v1571
    %v1586 = vpack.c.b16 %v1574, %v1573
    %v1587 = vpack.c.b16 %v1576, %v1575
    %v1588 = vpack.c.b16 %v1578, %v1577
    %v1589 = vpack.c.b16 %v1580, %v1579
    %v1590 = vpack.c.b16 %v1582, %v1581
    %1599 = vmatpush.bf16.msra.mxu0 %v1590
    %1600 = vmatpush.bf16.msra.mxu0 %v1589
    %1601 = vmatpush.bf16.msra.mxu0 %v1588
    %1602 = vmatpush.bf16.msra.mxu0 %v1587
    %1603 = vmatpush.bf16.msra.mxu0 %v1586
    %1604 = vmatpush.bf16.msra.mxu0 %v1585
    %1605 = vmatpush.bf16.msra.mxu0 %v1584
    %1606 = vmatpush.bf16.msra.mxu0 %v1583
    %1607 = vmatmul.bf16.gmra.mxu0 %v1527
    %v1608 = vpop.f32.mrf.mxu0
    %v1609 = vadd.f32 %v1549, %v1608
    %v1610 = vpop.f32.mrf.mxu0
    %v1611 = vadd.f32 %v1549, %v1610
    %1612 = vmatmul.bf16.gmra.mxu0 %v1528
    %v1613 = vpop.f32.mrf.mxu0
    %v1614 = vadd.f32 %v1549, %v1613
    %v1615 = vpop.f32.mrf.mxu0
    %v1616 = vadd.f32 %v1549, %v1615
    %1617 = vmatmul.bf16.gmra.mxu0 %v1529
    %v1618 = vpop.f32.mrf.mxu0
    %v1619 = vadd.f32 %v1549, %v1618
    %v1620 = vpop.f32.mrf.mxu0
    %v1621 = vadd.f32 %v1549, %v1620
    %1622 = vmatmul.bf16.gmra.mxu0 %v1530
    %v1623 = vpop.f32.mrf.mxu0
    %v1624 = vadd.f32 %v1549, %v1623
    %v1625 = vpop.f32.mrf.mxu0
    %v1626 = vadd.f32 %v1549, %v1625
    %1627 = vdwg.mxu0
    %v1628 = vmax.f32 %v1609, 0.0
    %v1629 = vmax.f32 %v1611, 0.0
    %v1630 = vmax.f32 %v1614, 0.0
    %v1631 = vmax.f32 %v1616, 0.0
    %v1632 = vmax.f32 %v1619, 0.0
    %v1633 = vmax.f32 %v1621, 0.0
    %v1634 = vmax.f32 %v1624, 0.0
    %v1635 = vmax.f32 %v1626, 0.0
    %v1636 = vpack.c.bf16 %v1629, %v1628
    %v1637 = vpack.c.bf16 %v1631, %v1630
    %v1638 = vpack.c.bf16 %v1633, %v1632
    %v1639 = vpack.c.bf16 %v1635, %v1634
    %v1640 = vld [vmem:[#allocation16] sm:$0xf]
    %v1641 = vld [vmem:[#allocation16 + $0x4] sm:$0xf]
    %v1642 = vld [vmem:[#allocation16 + $0x8] sm:$0xf]
    %v1643 = vld [vmem:[#allocation16 + $0xc] sm:$0xf]
    %v1644 = vld [vmem:[#allocation16 + $0x10] sm:$0xf]
    %v1645 = vld [vmem:[#allocation16 + $0x14] sm:$0xf]
    %v1646 = vld [vmem:[#allocation16 + $0x18] sm:$0xf]
    %v1647 = vld [vmem:[#allocation16 + $0x1c] sm:$0xf]
    %v1648 = vld [vmem:[#allocation16 + $0x20] sm:$0xf]
    %v1649 = vld [vmem:[#allocation16 + $0x24] sm:$0xf]
    %v1650 = vld [vmem:[#allocation16 + $0x28] sm:$0xf]
    %v1651 = vld [vmem:[#allocation16 + $0x2c] sm:$0xf]
    %v1652 = vld [vmem:[#allocation16 + $0x30] sm:$0xf]
    %v1653 = vld [vmem:[#allocation16 + $0x34] sm:$0xf]
    %v1654 = vld [vmem:[#allocation16 + $0x38] sm:$0xf]
    %v1655 = vld [vmem:[#allocation16 + $0x3c] sm:$0xf]
    %v1656 = vld [vmem:[%s14] sm:$0x1]
    %v1658 = vperm.slane %v1656, 0
    %v1676 = vunpack.c.l.b16 %v1640
    %v1677 = vunpack.c.l.b16 %v1641
    %v1678 = vunpack.c.l.b16 %v1642
    %v1679 = vunpack.c.l.b16 %v1643
    %v1680 = vunpack.c.l.b16 %v1644
    %v1681 = vunpack.c.l.b16 %v1645
    %v1682 = vunpack.c.l.b16 %v1646
    %v1683 = vunpack.c.l.b16 %v1647
    %v1684 = vunpack.c.l.b16 %v1648
    %v1685 = vunpack.c.l.b16 %v1649
    %v1686 = vunpack.c.l.b16 %v1650
    %v1687 = vunpack.c.l.b16 %v1651
    %v1688 = vunpack.c.l.b16 %v1652
    %v1689 = vunpack.c.l.b16 %v1653
    %v1690 = vunpack.c.l.b16 %v1654
    %v1691 = vunpack.c.l.b16 %v1655
    %v1692 = vpack.c.b16 %v1677, %v1676
    %v1693 = vpack.c.b16 %v1679, %v1678
    %v1694 = vpack.c.b16 %v1681, %v1680
    %v1695 = vpack.c.b16 %v1683, %v1682
    %v1696 = vpack.c.b16 %v1685, %v1684
    %v1697 = vpack.c.b16 %v1687, %v1686
    %v1698 = vpack.c.b16 %v1689, %v1688
    %v1699 = vpack.c.b16 %v1691, %v1690
    %1708 = vmatpush.bf16.msra.mxu0 %v1699
    %1709 = vmatpush.bf16.msra.mxu0 %v1698
    %1710 = vmatpush.bf16.msra.mxu0 %v1697
    %1711 = vmatpush.bf16.msra.mxu0 %v1696
    %1712 = vmatpush.bf16.msra.mxu0 %v1695
    %1713 = vmatpush.bf16.msra.mxu0 %v1694
    %1714 = vmatpush.bf16.msra.mxu0 %v1693
    %1715 = vmatpush.bf16.msra.mxu0 %v1692
    %1716 = vmatmul.bf16.gmra.mxu0 %v1636
    %v1717 = vpop.f32.mrf.mxu0
    %v1718 = vadd.f32 %v1658, %v1717
    %v1719 = vpop.f32.mrf.mxu0
    %v1720 = vadd.f32 %v1658, %v1719
    %1721 = vmatmul.bf16.gmra.mxu0 %v1637
    %v1722 = vpop.f32.mrf.mxu0
    %v1723 = vadd.f32 %v1658, %v1722
    %v1724 = vpop.f32.mrf.mxu0
    %v1725 = vadd.f32 %v1658, %v1724
    %1726 = vmatmul.bf16.gmra.mxu0 %v1638
    %v1727 = vpop.f32.mrf.mxu0
    %v1728 = vadd.f32 %v1658, %v1727
    %v1729 = vpop.f32.mrf.mxu0
    %v1730 = vadd.f32 %v1658, %v1729
    %1731 = vmatmul.bf16.gmra.mxu0 %v1639
    %v1732 = vpop.f32.mrf.mxu0
    %v1733 = vadd.f32 %v1658, %v1732
    %v1734 = vpop.f32.mrf.mxu0
    %v1735 = vadd.f32 %v1658, %v1734
    %1736 = vdwg.mxu0
    %v1737 = vmax.f32 %v1718, 0.0
    %v1738 = vmax.f32 %v1720, 0.0
    %v1739 = vmax.f32 %v1723, 0.0
    %v1740 = vmax.f32 %v1725, 0.0
    %v1741 = vmax.f32 %v1728, 0.0
    %v1742 = vmax.f32 %v1730, 0.0
    %v1743 = vmax.f32 %v1733, 0.0
    %v1744 = vmax.f32 %v1735, 0.0
    %v1745 = vpack.c.bf16 %v1738, %v1737
    %v1746 = vpack.c.bf16 %v1740, %v1739
    %v1747 = vpack.c.bf16 %v1742, %v1741
    %v1748 = vpack.c.bf16 %v1744, %v1743
    %v1749 = vld [vmem:[#allocation17] sm:$0xf]
    %v1750 = vld [vmem:[#allocation17 + $0x4] sm:$0xf]
    %v1751 = vld [vmem:[#allocation17 + $0x8] sm:$0xf]
    %v1752 = vld [vmem:[#allocation17 + $0xc] sm:$0xf]
    %v1753 = vld [vmem:[#allocation17 + $0x10] sm:$0xf]
    %v1754 = vld [vmem:[#allocation17 + $0x14] sm:$0xf]
    %v1755 = vld [vmem:[#allocation17 + $0x18] sm:$0xf]
    %v1756 = vld [vmem:[#allocation17 + $0x1c] sm:$0xf]
    %v1757 = vld [vmem:[#allocation17 + $0x20] sm:$0xf]
    %v1758 = vld [vmem:[#allocation17 + $0x24] sm:$0xf]
    %v1759 = vld [vmem:[#allocation17 + $0x28] sm:$0xf]
    %v1760 = vld [vmem:[#allocation17 + $0x2c] sm:$0xf]
    %v1761 = vld [vmem:[#allocation17 + $0x30] sm:$0xf]
    %v1762 = vld [vmem:[#allocation17 + $0x34] sm:$0xf]
    %v1763 = vld [vmem:[#allocation17 + $0x38] sm:$0xf]
    %v1764 = vld [vmem:[#allocation17 + $0x3c] sm:$0xf]
    %v1765 = vld [vmem:[%s16] sm:$0x1]
    %v1767 = vperm.slane %v1765, 0
    %v1785 = vunpack.c.l.b16 %v1749
    %v1786 = vunpack.c.l.b16 %v1750
    %v1787 = vunpack.c.l.b16 %v1751
    %v1788 = vunpack.c.l.b16 %v1752
    %v1789 = vunpack.c.l.b16 %v1753
    %v1790 = vunpack.c.l.b16 %v1754
    %v1791 = vunpack.c.l.b16 %v1755
    %v1792 = vunpack.c.l.b16 %v1756
    %v1793 = vunpack.c.l.b16 %v1757
    %v1794 = vunpack.c.l.b16 %v1758
    %v1795 = vunpack.c.l.b16 %v1759
    %v1796 = vunpack.c.l.b16 %v1760
    %v1797 = vunpack.c.l.b16 %v1761
    %v1798 = vunpack.c.l.b16 %v1762
    %v1799 = vunpack.c.l.b16 %v1763
    %v1800 = vunpack.c.l.b16 %v1764
    %v1801 = vpack.c.b16 %v1786, %v1785
    %v1802 = vpack.c.b16 %v1788, %v1787
    %v1803 = vpack.c.b16 %v1790, %v1789
    %v1804 = vpack.c.b16 %v1792, %v1791
    %v1805 = vpack.c.b16 %v1794, %v1793
    %v1806 = vpack.c.b16 %v1796, %v1795
    %v1807 = vpack.c.b16 %v1798, %v1797
    %v1808 = vpack.c.b16 %v1800, %v1799
    %1817 = vmatpush.bf16.msra.mxu0 %v1808
    %1818 = vmatpush.bf16.msra.mxu0 %v1807
    %1819 = vmatpush.bf16.msra.mxu0 %v1806
    %1820 = vmatpush.bf16.msra.mxu0 %v1805
    %1821 = vmatpush.bf16.msra.mxu0 %v1804
    %1822 = vmatpush.bf16.msra.mxu0 %v1803
    %1823 = vmatpush.bf16.msra.mxu0 %v1802
    %1824 = vmatpush.bf16.msra.mxu0 %v1801
    %1825 = vmatmul.bf16.gmra.mxu0 %v1745
    %v1826 = vpop.f32.mrf.mxu0
    %v1827 = vadd.f32 %v1767, %v1826
    %v1828 = vpop.f32.mrf.mxu0
    %v1829 = vadd.f32 %v1767, %v1828
    %1830 = vmatmul.bf16.gmra.mxu0 %v1746
    %v1831 = vpop.f32.mrf.mxu0
    %v1832 = vadd.f32 %v1767, %v1831
    %v1833 = vpop.f32.mrf.mxu0
    %v1834 = vadd.f32 %v1767, %v1833
    %1835 = vmatmul.bf16.gmra.mxu0 %v1747
    %v1836 = vpop.f32.mrf.mxu0
    %v1837 = vadd.f32 %v1767, %v1836
    %v1838 = vpop.f32.mrf.mxu0
    %v1839 = vadd.f32 %v1767, %v1838
    %1840 = vmatmul.bf16.gmra.mxu0 %v1748
    %v1841 = vpop.f32.mrf.mxu0
    %v1842 = vadd.f32 %v1767, %v1841
    %v1843 = vpop.f32.mrf.mxu0
    %v1844 = vadd.f32 %v1767, %v1843
    %1845 = vdwg.mxu0
    %v1846 = vmax.f32 %v1827, 0.0
    %v1847 = vmax.f32 %v1829, 0.0
    %v1848 = vmax.f32 %v1832, 0.0
    %v1849 = vmax.f32 %v1834, 0.0
    %v1850 = vmax.f32 %v1837, 0.0
    %v1851 = vmax.f32 %v1839, 0.0
    %v1852 = vmax.f32 %v1842, 0.0
    %v1853 = vmax.f32 %v1844, 0.0
    %v1854 = vpack.c.bf16 %v1847, %v1846
    %v1855 = vpack.c.bf16 %v1849, %v1848
    %v1856 = vpack.c.bf16 %v1851, %v1850
    %v1857 = vpack.c.bf16 %v1853, %v1852
    %v1858 = vld [vmem:[#allocation19] sm:$0xf]
    %v1859 = vld [vmem:[#allocation19 + $0x4] sm:$0xf]
    %v1860 = vld [vmem:[#allocation19 + $0x8] sm:$0xf]
    %v1861 = vld [vmem:[#allocation19 + $0xc] sm:$0xf]
    %v1862 = vld [vmem:[#allocation19 + $0x10] sm:$0xf]
    %v1863 = vld [vmem:[#allocation19 + $0x14] sm:$0xf]
    %v1864 = vld [vmem:[#allocation19 + $0x18] sm:$0xf]
    %v1865 = vld [vmem:[#allocation19 + $0x1c] sm:$0xf]
    %v1866 = vld [vmem:[#allocation19 + $0x20] sm:$0xf]
    %v1867 = vld [vmem:[#allocation19 + $0x24] sm:$0xf]
    %v1868 = vld [vmem:[#allocation19 + $0x28] sm:$0xf]
    %v1869 = vld [vmem:[#allocation19 + $0x2c] sm:$0xf]
    %v1870 = vld [vmem:[#allocation19 + $0x30] sm:$0xf]
    %v1871 = vld [vmem:[#allocation19 + $0x34] sm:$0xf]
    %v1872 = vld [vmem:[#allocation19 + $0x38] sm:$0xf]
    %v1873 = vld [vmem:[#allocation19 + $0x3c] sm:$0xf]
    %v1874 = vld [vmem:[%s18] sm:$0x1]
    %v1876 = vperm.slane %v1874, 0
    %v1894 = vunpack.c.l.b16 %v1858
    %v1895 = vunpack.c.l.b16 %v1859
    %v1896 = vunpack.c.l.b16 %v1860
    %v1897 = vunpack.c.l.b16 %v1861
    %v1898 = vunpack.c.l.b16 %v1862
    %v1899 = vunpack.c.l.b16 %v1863
    %v1900 = vunpack.c.l.b16 %v1864
    %v1901 = vunpack.c.l.b16 %v1865
    %v1902 = vunpack.c.l.b16 %v1866
    %v1903 = vunpack.c.l.b16 %v1867
    %v1904 = vunpack.c.l.b16 %v1868
    %v1905 = vunpack.c.l.b16 %v1869
    %v1906 = vunpack.c.l.b16 %v1870
    %v1907 = vunpack.c.l.b16 %v1871
    %v1908 = vunpack.c.l.b16 %v1872
    %v1909 = vunpack.c.l.b16 %v1873
    %v1910 = vpack.c.b16 %v1895, %v1894
    %v1911 = vpack.c.b16 %v1897, %v1896
    %v1912 = vpack.c.b16 %v1899, %v1898
    %v1913 = vpack.c.b16 %v1901, %v1900
    %v1914 = vpack.c.b16 %v1903, %v1902
    %v1915 = vpack.c.b16 %v1905, %v1904
    %v1916 = vpack.c.b16 %v1907, %v1906
    %v1917 = vpack.c.b16 %v1909, %v1908
    %1926 = vmatpush.bf16.msra.mxu0 %v1917
    %1927 = vmatpush.bf16.msra.mxu0 %v1916
    %1928 = vmatpush.bf16.msra.mxu0 %v1915
    %1929 = vmatpush.bf16.msra.mxu0 %v1914
    %1930 = vmatpush.bf16.msra.mxu0 %v1913
    %1931 = vmatpush.bf16.msra.mxu0 %v1912
    %1932 = vmatpush.bf16.msra.mxu0 %v1911
    %1933 = vmatpush.bf16.msra.mxu0 %v1910
    %1934 = vmatmul.bf16.gmra.mxu0 %v1854
    %v1935 = vpop.f32.mrf.mxu0
    %v1936 = vadd.f32 %v1876, %v1935
    %v1937 = vpop.f32.mrf.mxu0
    %v1938 = vadd.f32 %v1876, %v1937
    %1939 = vmatmul.bf16.gmra.mxu0 %v1855
    %v1940 = vpop.f32.mrf.mxu0
    %v1941 = vadd.f32 %v1876, %v1940
    %v1942 = vpop.f32.mrf.mxu0
    %v1943 = vadd.f32 %v1876, %v1942
    %1944 = vmatmul.bf16.gmra.mxu0 %v1856
    %v1945 = vpop.f32.mrf.mxu0
    %v1946 = vadd.f32 %v1876, %v1945
    %v1947 = vpop.f32.mrf.mxu0
    %v1948 = vadd.f32 %v1876, %v1947
    %1949 = vmatmul.bf16.gmra.mxu0 %v1857
    %v1950 = vpop.f32.mrf.mxu0
    %v1951 = vadd.f32 %v1876, %v1950
    %v1952 = vpop.f32.mrf.mxu0
    %v1953 = vadd.f32 %v1876, %v1952
    %1954 = vdwg.mxu0
    %v1955 = vmax.f32 %v1936, 0.0
    %v1956 = vmax.f32 %v1938, 0.0
    %v1957 = vmax.f32 %v1941, 0.0
    %v1958 = vmax.f32 %v1943, 0.0
    %v1959 = vmax.f32 %v1946, 0.0
    %v1960 = vmax.f32 %v1948, 0.0
    %v1961 = vmax.f32 %v1951, 0.0
    %v1962 = vmax.f32 %v1953, 0.0
    %v1963 = vpack.c.bf16 %v1956, %v1955
    %v1964 = vpack.c.bf16 %v1958, %v1957
    %v1965 = vpack.c.bf16 %v1960, %v1959
    %v1966 = vpack.c.bf16 %v1962, %v1961
    %v1967 = vld [vmem:[#allocation20] sm:$0xf]
    %v1968 = vld [vmem:[#allocation20 + $0x4] sm:$0xf]
    %v1969 = vld [vmem:[#allocation20 + $0x8] sm:$0xf]
    %v1970 = vld [vmem:[#allocation20 + $0xc] sm:$0xf]
    %v1971 = vld [vmem:[#allocation20 + $0x10] sm:$0xf]
    %v1972 = vld [vmem:[#allocation20 + $0x14] sm:$0xf]
    %v1973 = vld [vmem:[#allocation20 + $0x18] sm:$0xf]
    %v1974 = vld [vmem:[#allocation20 + $0x1c] sm:$0xf]
    %v1975 = vld [vmem:[#allocation20 + $0x20] sm:$0xf]
    %v1976 = vld [vmem:[#allocation20 + $0x24] sm:$0xf]
    %v1977 = vld [vmem:[#allocation20 + $0x28] sm:$0xf]
    %v1978 = vld [vmem:[#allocation20 + $0x2c] sm:$0xf]
    %v1979 = vld [vmem:[#allocation20 + $0x30] sm:$0xf]
    %v1980 = vld [vmem:[#allocation20 + $0x34] sm:$0xf]
    %v1981 = vld [vmem:[#allocation20 + $0x38] sm:$0xf]
    %v1982 = vld [vmem:[#allocation20 + $0x3c] sm:$0xf]
    %v1983 = vld [vmem:[%s20] sm:$0x1]
    %v1985 = vperm.slane %v1983, 0
    %v2003 = vunpack.c.l.b16 %v1967
    %v2004 = vunpack.c.l.b16 %v1968
    %v2005 = vunpack.c.l.b16 %v1969
    %v2006 = vunpack.c.l.b16 %v1970
    %v2007 = vunpack.c.l.b16 %v1971
    %v2008 = vunpack.c.l.b16 %v1972
    %v2009 = vunpack.c.l.b16 %v1973
    %v2010 = vunpack.c.l.b16 %v1974
    %v2011 = vunpack.c.l.b16 %v1975
    %v2012 = vunpack.c.l.b16 %v1976
    %v2013 = vunpack.c.l.b16 %v1977
    %v2014 = vunpack.c.l.b16 %v1978
    %v2015 = vunpack.c.l.b16 %v1979
    %v2016 = vunpack.c.l.b16 %v1980
    %v2017 = vunpack.c.l.b16 %v1981
    %v2018 = vunpack.c.l.b16 %v1982
    %v2019 = vpack.c.b16 %v2004, %v2003
    %v2020 = vpack.c.b16 %v2006, %v2005
    %v2021 = vpack.c.b16 %v2008, %v2007
    %v2022 = vpack.c.b16 %v2010, %v2009
    %v2023 = vpack.c.b16 %v2012, %v2011
    %v2024 = vpack.c.b16 %v2014, %v2013
    %v2025 = vpack.c.b16 %v2016, %v2015
    %v2026 = vpack.c.b16 %v2018, %v2017
    %2035 = vmatpush.bf16.msra.mxu0 %v2026
    %2036 = vmatpush.bf16.msra.mxu0 %v2025
    %2037 = vmatpush.bf16.msra.mxu0 %v2024
    %2038 = vmatpush.bf16.msra.mxu0 %v2023
    %2039 = vmatpush.bf16.msra.mxu0 %v2022
    %2040 = vmatpush.bf16.msra.mxu0 %v2021
    %2041 = vmatpush.bf16.msra.mxu0 %v2020
    %2042 = vmatpush.bf16.msra.mxu0 %v2019
    %2043 = vmatmul.bf16.gmra.mxu0 %v1963
    %v2044 = vpop.f32.mrf.mxu0
    %v2045 = vadd.f32 %v1985, %v2044
    %v2046 = vpop.f32.mrf.mxu0
    %v2047 = vadd.f32 %v1985, %v2046
    %2048 = vmatmul.bf16.gmra.mxu0 %v1964
    %v2049 = vpop.f32.mrf.mxu0
    %v2050 = vadd.f32 %v1985, %v2049
    %v2051 = vpop.f32.mrf.mxu0
    %v2052 = vadd.f32 %v1985, %v2051
    %2053 = vmatmul.bf16.gmra.mxu0 %v1965
    %v2054 = vpop.f32.mrf.mxu0
    %v2055 = vadd.f32 %v1985, %v2054
    %v2056 = vpop.f32.mrf.mxu0
    %v2057 = vadd.f32 %v1985, %v2056
    %2058 = vmatmul.bf16.gmra.mxu0 %v1966
    %v2059 = vpop.f32.mrf.mxu0
    %v2060 = vadd.f32 %v1985, %v2059
    %v2061 = vpop.f32.mrf.mxu0
    %v2062 = vadd.f32 %v1985, %v2061
    %2063 = vdwg.mxu0
    %v2064 = vxor.u32 %v2045, 2147483648
    %v2065 = vxor.u32 %v2047, 2147483648
    %v2066 = vxor.u32 %v2050, 2147483648
    %v2067 = vxor.u32 %v2052, 2147483648
    %v2068 = vxor.u32 %v2055, 2147483648
    %v2069 = vxor.u32 %v2057, 2147483648
    %v2070 = vxor.u32 %v2060, 2147483648
    %v2071 = vxor.u32 %v2062, 2147483648
    %v2072 = vmul.f32 %v2064, 1.442695
    %v2073 = vpow.pop %v2072
    %v2074 = vmul.f32 %v2065, 1.442695
    %v2075 = vpow.pop %v2074
    %v2076 = vmul.f32 %v2066, 1.442695
    %v2077 = vpow.pop %v2076
    %v2078 = vmul.f32 %v2067, 1.442695
    %v2079 = vpow.pop %v2078
    %v2080 = vmul.f32 %v2068, 1.442695
    %v2081 = vpow.pop %v2080
    %v2082 = vmul.f32 %v2069, 1.442695
    %v2083 = vpow.pop %v2082
    %v2084 = vmul.f32 %v2070, 1.442695
    %v2085 = vpow.pop %v2084
    %v2086 = vmul.f32 %v2071, 1.442695
    %v2087 = vpow.pop %v2086
    %v2088 = vadd.f32 %v2073, 1.0
    %v2089 = vadd.f32 %v2075, 1.0
    %v2090 = vadd.f32 %v2077, 1.0
    %v2091 = vadd.f32 %v2079, 1.0
    %v2092 = vadd.f32 %v2081, 1.0
    %v2093 = vadd.f32 %v2083, 1.0
    %v2094 = vadd.f32 %v2085, 1.0
    %v2095 = vadd.f32 %v2087, 1.0
    %v2096 = vrcp.pop %v2088
    %v2097 = vmul.f32 %v2088, %v2096
    %v2098 = vsub.f32 1.0, %v2097
    %v2099 = vmul.f32 %v2096, %v2098
    %v2100 = vadd.f32 %v2096, %v2099
    %vm2101 = vweird.f32 %v2088
    %vm2102 = vweird.f32 %v2096
    %vm2103 = vmor %vm2101, %vm2102
    %v2104 = vsel %vm2103, %v2096, %v2100
    %v2105 = vand.u32 2147483647, %v2088
    %vm2106 = vcmp.eq.f32.partialorder %v2105, 8.507059e+37
    %v2107 = vand.u32 %v2088, 2147483648
    %v2108 = vor.u32 1.1754944e-38, %v2107
    %v2109 = vsel %vm2106, %v2108, %v2104
    %v2110 = vmul.f32 1.0, %v2109
    %v2111 = vrcp.pop %v2089
    %v2112 = vmul.f32 %v2089, %v2111
    %v2113 = vsub.f32 1.0, %v2112
    %v2114 = vmul.f32 %v2111, %v2113
    %v2115 = vadd.f32 %v2111, %v2114
    %vm2116 = vweird.f32 %v2089
    %vm2117 = vweird.f32 %v2111
    %vm2118 = vmor %vm2116, %vm2117
    %v2119 = vsel %vm2118, %v2111, %v2115
    %v2120 = vand.u32 2147483647, %v2089
    %vm2121 = vcmp.eq.f32.partialorder %v2120, 8.507059e+37
    %v2122 = vand.u32 %v2089, 2147483648
    %v2123 = vor.u32 1.1754944e-38, %v2122
    %v2124 = vsel %vm2121, %v2123, %v2119
    %v2125 = vmul.f32 1.0, %v2124
    %v2126 = vrcp.pop %v2090
    %v2127 = vmul.f32 %v2090, %v2126
    %v2128 = vsub.f32 1.0, %v2127
    %v2129 = vmul.f32 %v2126, %v2128
    %v2130 = vadd.f32 %v2126, %v2129
    %vm2131 = vweird.f32 %v2090
    %vm2132 = vweird.f32 %v2126
    %vm2133 = vmor %vm2131, %vm2132
    %v2134 = vsel %vm2133, %v2126, %v2130
    %v2135 = vand.u32 2147483647, %v2090
    %vm2136 = vcmp.eq.f32.partialorder %v2135, 8.507059e+37
    %v2137 = vand.u32 %v2090, 2147483648
    %v2138 = vor.u32 1.1754944e-38, %v2137
    %v2139 = vsel %vm2136, %v2138, %v2134
    %v2140 = vmul.f32 1.0, %v2139
    %v2141 = vrcp.pop %v2091
    %v2142 = vmul.f32 %v2091, %v2141
    %v2143 = vsub.f32 1.0, %v2142
    %v2144 = vmul.f32 %v2141, %v2143
    %v2145 = vadd.f32 %v2141, %v2144
    %vm2146 = vweird.f32 %v2091
    %vm2147 = vweird.f32 %v2141
    %vm2148 = vmor %vm2146, %vm2147
    %v2149 = vsel %vm2148, %v2141, %v2145
    %v2150 = vand.u32 2147483647, %v2091
    %vm2151 = vcmp.eq.f32.partialorder %v2150, 8.507059e+37
    %v2152 = vand.u32 %v2091, 2147483648
    %v2153 = vor.u32 1.1754944e-38, %v2152
    %v2154 = vsel %vm2151, %v2153, %v2149
    %v2155 = vmul.f32 1.0, %v2154
    %v2156 = vrcp.pop %v2092
    %v2157 = vmul.f32 %v2092, %v2156
    %v2158 = vsub.f32 1.0, %v2157
    %v2159 = vmul.f32 %v2156, %v2158
    %v2160 = vadd.f32 %v2156, %v2159
    %vm2161 = vweird.f32 %v2092
    %vm2162 = vweird.f32 %v2156
    %vm2163 = vmor %vm2161, %vm2162
    %v2164 = vsel %vm2163, %v2156, %v2160
    %v2165 = vand.u32 2147483647, %v2092
    %vm2166 = vcmp.eq.f32.partialorder %v2165, 8.507059e+37
    %v2167 = vand.u32 %v2092, 2147483648
    %v2168 = vor.u32 1.1754944e-38, %v2167
    %v2169 = vsel %vm2166, %v2168, %v2164
    %v2170 = vmul.f32 1.0, %v2169
    %v2171 = vrcp.pop %v2093
    %v2172 = vmul.f32 %v2093, %v2171
    %v2173 = vsub.f32 1.0, %v2172
    %v2174 = vmul.f32 %v2171, %v2173
    %v2175 = vadd.f32 %v2171, %v2174
    %vm2176 = vweird.f32 %v2093
    %vm2177 = vweird.f32 %v2171
    %vm2178 = vmor %vm2176, %vm2177
    %v2179 = vsel %vm2178, %v2171, %v2175
    %v2180 = vand.u32 2147483647, %v2093
    %vm2181 = vcmp.eq.f32.partialorder %v2180, 8.507059e+37
    %v2182 = vand.u32 %v2093, 2147483648
    %v2183 = vor.u32 1.1754944e-38, %v2182
    %v2184 = vsel %vm2181, %v2183, %v2179
    %v2185 = vmul.f32 1.0, %v2184
    %v2186 = vrcp.pop %v2094
    %v2187 = vmul.f32 %v2094, %v2186
    %v2188 = vsub.f32 1.0, %v2187
    %v2189 = vmul.f32 %v2186, %v2188
    %v2190 = vadd.f32 %v2186, %v2189
    %vm2191 = vweird.f32 %v2094
    %vm2192 = vweird.f32 %v2186
    %vm2193 = vmor %vm2191, %vm2192
    %v2194 = vsel %vm2193, %v2186, %v2190
    %v2195 = vand.u32 2147483647, %v2094
    %vm2196 = vcmp.eq.f32.partialorder %v2195, 8.507059e+37
    %v2197 = vand.u32 %v2094, 2147483648
    %v2198 = vor.u32 1.1754944e-38, %v2197
    %v2199 = vsel %vm2196, %v2198, %v2194
    %v2200 = vmul.f32 1.0, %v2199
    %v2201 = vrcp.pop %v2095
    %v2202 = vmul.f32 %v2095, %v2201
    %v2203 = vsub.f32 1.0, %v2202
    %v2204 = vmul.f32 %v2201, %v2203
    %v2205 = vadd.f32 %v2201, %v2204
    %vm2206 = vweird.f32 %v2095
    %vm2207 = vweird.f32 %v2201
    %vm2208 = vmor %vm2206, %vm2207
    %v2209 = vsel %vm2208, %v2201, %v2205
    %v2210 = vand.u32 2147483647, %v2095
    %vm2211 = vcmp.eq.f32.partialorder %v2210, 8.507059e+37
    %v2212 = vand.u32 %v2095, 2147483648
    %v2213 = vor.u32 1.1754944e-38, %v2212
    %v2214 = vsel %vm2211, %v2213, %v2209
    %v2215 = vmul.f32 1.0, %v2214
    %2216 = vst [vmem:[#allocation22] sm:$0xff] %v2110
    %2217 = vst [vmem:[#allocation22 + $0x8] sm:$0xff] %v2125
    %2218 = vst [vmem:[#allocation22 + $0x10] sm:$0xff] %v2140
    %2219 = vst [vmem:[#allocation22 + $0x18] sm:$0xff] %v2155
    %2220 = vst [vmem:[#allocation22 + $0x20] sm:$0xff] %v2170
    %2221 = vst [vmem:[#allocation22 + $0x28] sm:$0xff] %v2185
    %2222 = vst [vmem:[#allocation22 + $0x30] sm:$0xff] %v2200
    %2223 = vst [vmem:[#allocation22 + $0x38] sm:$0xff] %v2215
    // Predicated region
    $region134: #{tpu_custom_call.1} parent=1 // pred_check
      _
    $region135: #{tpu_custom_call.1} parent=1 // pred_check_branch
      %2225 = sbr.rel (0) target = $region137
    $region136: #{tpu_custom_call.1} parent=1 // pred_region
      %2227 = vsyncadd [#allocation4], 0
      %s2228 = sshll.u32 [#allocation22], 4
      %s2229 = int_to_ptr.vmem [resolvable:$true] %s2228
      %s2230 = sshll.u32 %s21, 4
      %s2231 = int_to_ptr.hbm [resolvable:$true] %s2230
      %2236 = dma.vmem_to_hbm [thread:$0]  %s2229, 1024, %s2231, [#allocation4], 128, 128, 8
    $region137: #{tpu_custom_call.1} parent=1 // pred_fallthru
      _
    // Predicated region
    $region138: #{tpu_custom_call.1} parent=1 // pred_check
      _
    $region139: #{tpu_custom_call.1} parent=1 // pred_check_branch
      %2238 = sbr.rel (0) target = $region141
    $region140: #{tpu_custom_call.1} parent=1 // pred_region
      %2240 = dma.done [#allocation4], 1024
    $region141: #{tpu_custom_call.1} parent=1 // pred_fallthru
      _
    %2241 = vsyncpa [#allocation3], 1
    %2242 = vsyncpa [#allocation6], 1
    %2243 = vsyncpa [#allocation9], 1
    %2244 = vsyncpa [#allocation12], 1
    %2245 = vsyncpa [#allocation15], 1
    %2246 = vsyncpa [#allocation18], 1
    %2247 = vsyncpa [#allocation21], 1
    %2248 = vsyncpa [#allocation4], 1

</llo_original>
